<compile_context>
chip_gen: v7x
topology: tpu7x:2x2x1
jax: 0.10.0
libtpu: 0.0.40
codegen_flags: <defaults>
</compile_context>

<pallas_src>
import jax
import jax.numpy as jnp
from jax.experimental import pallas as pl
from jax.experimental.pallas import tpu as pltpu  # noqa: F401  (TPU backend assumed)

L = 3        # simplex levels (nodes / edges / triangles)
N_PAD = 32   # padded number of simplices per level (sublane axis)
M_PAD = 16   # padded per-level input-feature width
KP = 128     # padded per-head output width (lane-dense store path)


def _sat_fused_kernel(xbd_ref, wstk_ref, adj_ref, aall_ref, out_ref):
    """All 3 TestSAT levels x 2 heads in a single invocation.

    xbd_ref  : (L*N, L*M)    block-diagonal stacked level features
    wstk_ref : (L*M, 2*KP)   row-stacked per-level [W_head0 | W_head1]
    adj_ref  : (L, 2, N, N)  per-level, per-head signed orientation (dense, 0 = absent)
    aall_ref : (2*KP, 4*L)   per-level columns [a1_h0, a2_h0, a1_h1, a2_h1];
                             head h occupies rows h*KP .. h*KP+K
    out_ref  : (L*N, KP)     relu(head0 + head1) per level, lane-dense
    """
    n_lvl, n_heads, n, _ = adj_ref.shape
    kp = out_ref.shape[-1]

    # One MXU matmul: input projections for all levels & both heads.
    feats_all = jnp.dot(xbd_ref[...], wstk_ref[...],
                        preferred_element_type=jnp.float32)        # (L*N, 2*KP)
    af_all = jnp.abs(feats_all)
    # One MXU matmul: a_1 / a_2 projections for all levels & both heads.
    proj_all = jnp.dot(af_all, aall_ref[...],
                       preferred_element_type=jnp.float32)         # (L*N, 4*L)

    for l in range(n_lvl):                       # static unroll over levels
        r0 = l * n
        feats_both = feats_all[r0:r0 + n, :]                       # (N, 2*KP) aligned sublane slice
        c0 = 2 * n_heads * l
        proj = proj_all[r0:r0 + n, c0:c0 + 2 * n_heads]            # (N, 4)
        # single small XLU transpose shared by both heads' a_2 columns
        a2_rows = jnp.concatenate(
            [proj[:, 2 * h + 1:2 * h + 2] for h in range(n_heads)], axis=1).T  # (2, N)

        acc = None
        for h in range(n_heads):                 # static unroll over heads
            adj = adj_ref[l, h]                  # (N, N)
            mask = adj != 0.0
            s = proj[:, 2 * h:2 * h + 1] + a2_rows[h:h + 1, :]     # (N, N)
            s_m = jnp.where(mask, s, -1e30)
            row_max = jnp.max(s_m, axis=1, keepdims=True)
            ex = jnp.exp(s_m - row_max)
            denom = jnp.sum(ex, axis=1, keepdims=True)
            inv = 1.0 / denom                    # exact; approx EUP reciprocal would cost accuracy
            p = ex * (adj * inv)                 # signed attention, masked entries exactly 0
            feats_h = feats_both[:, h * kp:(h + 1) * kp]           # lane slice @ 0 / 128 (tile aligned)
            contrib = jnp.dot(p, feats_h, preferred_element_type=jnp.float32)
            acc = contrib if acc is None else acc + contrib
        out_ref[r0:r0 + n, :] = jnp.maximum(acc, 0.0)


def sat_testnet(xbd, wstk, adjs, aall):
    """Fused TestSAT forward: one grid-less pallas_call, everything VMEM resident."""
    ln = xbd.shape[0]
    kp = wstk.shape[1] // 2
    full = lambda a: pl.BlockSpec(a.shape, lambda *_: (0,) * a.ndim)
    return pl.pallas_call(
        _sat_fused_kernel,
        out_shape=jax.ShapeDtypeStruct((ln, kp), jnp.float32),
        in_specs=[full(xbd), full(wstk), full(adjs), full(aall)],
        out_specs=pl.BlockSpec((ln, kp), lambda *_: (0, 0)),
    )(xbd, wstk, adjs, aall)


# ---------------- pure-JAX reference (for correctness check) ----------------
def _sat_head_ref(x, adj, w, a):
    feats = x @ w                               # (n, k)
    af = jnp.abs(feats)
    a1 = af @ a[0]                              # (n,)
    a2 = af @ a[1]                              # (n,)
    s = a1[:, None] + a2[None, :]
    mask = adj != 0.0
    s_m = jnp.where(mask, s, -1e30)
    ex = jnp.exp(s_m - jnp.max(s_m, axis=1, keepdims=True))
    att = ex / jnp.sum(ex, axis=1, keepdims=True)
    return (att * adj) @ feats


def _level_ref(x, adj2, w2, a2):
    out = sum(_sat_head_ref(x, adj2[h], w2[h], a2[h]) for h in range(2))
    return jnp.maximum(out, 0.0)


# --------------------------------- driver -----------------------------------
def _make_adj(key, n):
    """Dense signed 'sparse' orientation matrix, ~40% nonzeros + nonzero diag."""
    k1, k2 = jax.random.split(key)
    vals = jax.random.normal(k1, (n, n), jnp.float32)
    keep = jax.random.uniform(k2, (n, n)) < 0.4
    adj = jnp.where(keep, vals, 0.0)
    return adj + 2.0 * jnp.eye(n, dtype=jnp.float32)


if __name__ == "__main__":
    key = jax.random.PRNGKey(0)
    ks = jax.random.split(key, 16)

    out_size = 32                 # per-head output width K
    n_lv = (16, 24, 8)            # nodes / edges / triangles
    m_lv = (8, 16, 8)             # num_node_feats / num_edge_feats / num_triangle_feats

    # simplicial-complex features
    X0 = jax.random.normal(ks[0], (n_lv[0], m_lv[0]), jnp.float32)
    X1 = jax.random.normal(ks[1], (n_lv[1], m_lv[1]), jnp.float32)
    X2 = jax.random.normal(ks[2], (n_lv[2], m_lv[2]), jnp.float32)

    # Laplacians: L0, (L1_up, L1_down), L2  (signed sparse -> dense with zeros)
    L0 = _make_adj(ks[3], n_lv[0])
    L1_up = _make_adj(ks[4], n_lv[1])
    L1_dn = _make_adj(ks[5], n_lv[1])
    L2 = _make_adj(ks[6], n_lv[2])

    # deterministic parameters (bias=False as in TestSAT), 2 heads per level
    def init_params(kw, ka, m):
        w = 0.1 * jax.random.normal(kw, (2, m, out_size), jnp.float32)   # layer.weight^T per head
        a = 0.1 * jax.random.normal(ka, (2, 2, out_size), jnp.float32)   # [wa1 ; wa2] per head
        return w, a

    W0, A0 = init_params(ks[7], ks[8], m_lv[0])
    W1, A1 = init_params(ks[9], ks[10], m_lv[1])
    W2, A2 = init_params(ks[11], ks[12], m_lv[2])

    # per-head adjacency: layer1/layer3 share one Laplacian, layer2 zips (up, down)
    adj0 = jnp.stack([L0, L0])
    adj1 = jnp.stack([L1_up, L1_dn])
    adj2 = jnp.stack([L2, L2])

    # ---- host-side packing (pure layout plumbing) ---------------------------
    K = out_size
    xbd = jnp.zeros((L * N_PAD, L * M_PAD), jnp.float32)     # block-diagonal features
    wstk = jnp.zeros((L * M_PAD, 2 * KP), jnp.float32)       # row-stacked [W_h0 | W_h1]
    adjs = jnp.zeros((L, 2, N_PAD, N_PAD), jnp.float32)
    aall = jnp.zeros((2 * KP, 4 * L), jnp.float32)           # stacked a1/a2 vectors

    levels = ((X0, adj0, W0, A0), (X1, adj1, W1, A1), (X2, adj2, W2, A2))
    for l, (x, adjh, w, a) in enumerate(levels):
        n, m = x.shape
        xbd = xbd.at[l * N_PAD:l * N_PAD + n, l * M_PAD:l * M_PAD + m].set(x)
        for h in range(2):
            wstk = wstk.at[l * M_PAD:l * M_PAD + m, h * KP:h * KP + K].set(w[h])
            adjs = adjs.at[l, h, :n, :n].set(adjh[h])
            aall = aall.at[h * KP:h * KP + K, 4 * l + 2 * h].set(a[h, 0])
            aall = aall.at[h * KP:h * KP + K, 4 * l + 2 * h + 1].set(a[h, 1])

    # ---- single fused kernel call -------------------------------------------
    out = jax.block_until_ready(sat_testnet(xbd, wstk, adjs, aall))   # (3N, 128)
    Y0 = out[0 * N_PAD:0 * N_PAD + n_lv[0], :K]
    Y1 = out[1 * N_PAD:1 * N_PAD + n_lv[1], :K]
    Y2 = out[2 * N_PAD:2 * N_PAD + n_lv[2], :K]

    # ---- verify against pure-JAX reference ----------------------------------
    R0 = _level_ref(X0, adj0, W0, A0)
    R1 = _level_ref(X1, adj1, W1, A1)
    R2 = _level_ref(X2, adj2, W2, A2)
    assert Y0.shape == (n_lv[0], out_size)
    assert Y1.shape == (n_lv[1], out_size)
    assert Y2.shape == (n_lv[2], out_size)
    # Tolerance covers MXU f32-pass precision differences between the Pallas
    # matmuls and XLA default-precision matmuls in the pure-JAX reference.
    tol = dict(rtol=2e-2, atol=2e-2)
    assert jnp.allclose(Y0, R0, **tol)
    assert jnp.allclose(Y1, R1, **tol)
    assert jnp.allclose(Y2, R2, **tol)
    # structural padding invariants (exact zeros)
    assert jnp.all(out[:, K:] == 0.0)
    for l in range(L):
        assert jnp.all(out[l * N_PAD + n_lv[l]:(l + 1) * N_PAD] == 0.0)

    print("KERNEL_OK")
</pallas_src>

<mosaic_0001>
module attributes {stable_mosaic.version = 11 : i64} {
  func.func @_sat_fused_kernel(%arg0: memref<96x48xf32, #tpu.memory_space<vmem>>, %arg1: memref<48x256xf32, #tpu.memory_space<vmem>>, %arg2: memref<3x2x32x32xf32, #tpu.memory_space<vmem>>, %arg3: memref<256x12xf32, #tpu.memory_space<vmem>>, %arg4: memref<96x128xf32, #tpu.memory_space<vmem>>) attributes {dimension_semantics = [], scalar_prefetch = 0 : i64, scratch_operands = 0 : i64, tpu.core_type = #tpu.core_type<tc>} {
    %c0 = arith.constant 0 : index
    %c0_0 = arith.constant 0 : index
    %0 = vector.load %arg0[%c0, %c0_0] : memref<96x48xf32, #tpu.memory_space<vmem>>, vector<96x48xf32>
    %c0_1 = arith.constant 0 : index
    %c0_2 = arith.constant 0 : index
    %1 = vector.load %arg1[%c0_1, %c0_2] : memref<48x256xf32, #tpu.memory_space<vmem>>, vector<48x256xf32>
    %cst = arith.constant dense<0.000000e+00> : vector<96x256xf32>
    %2 = tpu.matmul %0, %1, %cst {dimension_numbers = #tpu.dot_dimension_numbers<[1], [0], [0], [1], [0, 0, 1, 1], [], []>} : vector<96x48xf32>, vector<48x256xf32>, vector<96x256xf32> -> vector<96x256xf32>
    %3 = math.absf %2 : vector<96x256xf32>
    %c0_3 = arith.constant 0 : index
    %c0_4 = arith.constant 0 : index
    %4 = vector.load %arg3[%c0_3, %c0_4] : memref<256x12xf32, #tpu.memory_space<vmem>>, vector<256x12xf32>
    %cst_5 = arith.constant dense<0.000000e+00> : vector<96x12xf32>
    %5 = tpu.matmul %3, %4, %cst_5 {dimension_numbers = #tpu.dot_dimension_numbers<[1], [0], [0], [1], [0, 0, 1, 1], [], []>} : vector<96x256xf32>, vector<256x12xf32>, vector<96x12xf32> -> vector<96x12xf32>
    %6 = vector.extract_strided_slice %2 {offsets = [0, 0], sizes = [32, 256], strides = [1, 1]} : vector<96x256xf32> to vector<32x256xf32>
    %7 = vector.extract_strided_slice %5 {offsets = [0, 0], sizes = [32, 4], strides = [1, 1]} : vector<96x12xf32> to vector<32x4xf32>
    %8 = vector.extract_strided_slice %7 {offsets = [0, 1], sizes = [32, 1], strides = [1, 1]} : vector<32x4xf32> to vector<32x1xf32>
    %9 = vector.extract_strided_slice %7 {offsets = [0, 3], sizes = [32, 1], strides = [1, 1]} : vector<32x4xf32> to vector<32x1xf32>
    %10 = tpu.concatenate %8, %9 in 1 : vector<32x1xf32>, vector<32x1xf32> -> vector<32x2xf32>
    %11 = tpu.transpose %10, [1, 0] : vector<32x2xf32> -> vector<2x32xf32>
    %c0_6 = arith.constant 0 : index
    %c0_7 = arith.constant 0 : index
    %c0_8 = arith.constant 0 : index
    %c0_9 = arith.constant 0 : index
    %12 = vector.load %arg2[%c0_6, %c0_7, %c0_8, %c0_9] : memref<3x2x32x32xf32, #tpu.memory_space<vmem>>, vector<1x1x32x32xf32>
    %13 = vector.shape_cast %12 : vector<1x1x32x32xf32> to vector<32x32xf32>
    %cst_10 = arith.constant 0.000000e+00 : f32
    %14 = vector.broadcast %cst_10 : f32 to vector<32x32xf32>
    %15 = arith.cmpf one, %13, %14 : vector<32x32xf32>
    %16 = vector.extract_strided_slice %7 {offsets = [0, 0], sizes = [32, 1], strides = [1, 1]} : vector<32x4xf32> to vector<32x1xf32>
    %17 = vector.extract_strided_slice %11 {offsets = [0, 0], sizes = [1, 32], strides = [1, 1]} : vector<2x32xf32> to vector<1x32xf32>
    %18 = vector.broadcast %16 : vector<32x1xf32> to vector<32x32xf32>
    %19 = vector.broadcast %17 : vector<1x32xf32> to vector<32x32xf32>
    %20 = arith.addf %18, %19 : vector<32x32xf32>
    %cst_11 = arith.constant -1.000000e+30 : f32
    %21 = vector.broadcast %cst_11 : f32 to vector<32x32xf32>
    %22 = arith.select %15, %20, %21 : vector<32x32xi1>, vector<32x32xf32>
    %cst_12 = arith.constant dense<0xFF800000> : vector<32xf32>
    %23 = vector.multi_reduction <maximumf>, %22, %cst_12 [1] : vector<32x32xf32> to vector<32xf32>
    %24 = vector.shape_cast %23 : vector<32xf32> to vector<32x1xf32>
    %25 = vector.broadcast %24 : vector<32x1xf32> to vector<32x32xf32>
    %26 = arith.subf %22, %25 : vector<32x32xf32>
    %27 = math.exp %26 : vector<32x32xf32>
    %cst_13 = arith.constant dense<0.000000e+00> : vector<32xf32>
    %28 = vector.multi_reduction <add>, %27, %cst_13 [1] : vector<32x32xf32> to vector<32xf32>
    %29 = vector.shape_cast %28 : vector<32xf32> to vector<32x1xf32>
    %cst_14 = arith.constant 1.000000e+00 : f32
    %30 = vector.broadcast %cst_14 : f32 to vector<32x1xf32>
    %31 = arith.divf %30, %29 : vector<32x1xf32>
    %32 = vector.broadcast %31 : vector<32x1xf32> to vector<32x32xf32>
    %33 = arith.mulf %13, %32 : vector<32x32xf32>
    %34 = arith.mulf %27, %33 : vector<32x32xf32>
    %35 = vector.extract_strided_slice %6 {offsets = [0, 0], sizes = [32, 128], strides = [1, 1]} : vector<32x256xf32> to vector<32x128xf32>
    %cst_15 = arith.constant dense<0.000000e+00> : vector<32x128xf32>
    %36 = tpu.matmul %34, %35, %cst_15 {dimension_numbers = #tpu.dot_dimension_numbers<[1], [0], [0], [1], [0, 0, 1, 1], [], []>} : vector<32x32xf32>, vector<32x128xf32>, vector<32x128xf32> -> vector<32x128xf32>
    %c0_16 = arith.constant 0 : index
    %c1 = arith.constant 1 : index
    %c0_17 = arith.constant 0 : index
    %c0_18 = arith.constant 0 : index
    %37 = vector.load %arg2[%c0_16, %c1, %c0_17, %c0_18] : memref<3x2x32x32xf32, #tpu.memory_space<vmem>>, vector<1x1x32x32xf32>
    %38 = vector.shape_cast %37 : vector<1x1x32x32xf32> to vector<32x32xf32>
    %cst_19 = arith.constant 0.000000e+00 : f32
    %39 = vector.broadcast %cst_19 : f32 to vector<32x32xf32>
    %40 = arith.cmpf one, %38, %39 : vector<32x32xf32>
    %41 = vector.extract_strided_slice %7 {offsets = [0, 2], sizes = [32, 1], strides = [1, 1]} : vector<32x4xf32> to vector<32x1xf32>
    %42 = vector.extract_strided_slice %11 {offsets = [1, 0], sizes = [1, 32], strides = [1, 1]} : vector<2x32xf32> to vector<1x32xf32>
    %43 = vector.broadcast %41 : vector<32x1xf32> to vector<32x32xf32>
    %44 = vector.broadcast %42 : vector<1x32xf32> to vector<32x32xf32>
    %45 = arith.addf %43, %44 : vector<32x32xf32>
    %cst_20 = arith.constant -1.000000e+30 : f32
    %46 = vector.broadcast %cst_20 : f32 to vector<32x32xf32>
    %47 = arith.select %40, %45, %46 : vector<32x32xi1>, vector<32x32xf32>
    %cst_21 = arith.constant dense<0xFF800000> : vector<32xf32>
    %48 = vector.multi_reduction <maximumf>, %47, %cst_21 [1] : vector<32x32xf32> to vector<32xf32>
    %49 = vector.shape_cast %48 : vector<32xf32> to vector<32x1xf32>
    %50 = vector.broadcast %49 : vector<32x1xf32> to vector<32x32xf32>
    %51 = arith.subf %47, %50 : vector<32x32xf32>
    %52 = math.exp %51 : vector<32x32xf32>
    %cst_22 = arith.constant dense<0.000000e+00> : vector<32xf32>
    %53 = vector.multi_reduction <add>, %52, %cst_22 [1] : vector<32x32xf32> to vector<32xf32>
    %54 = vector.shape_cast %53 : vector<32xf32> to vector<32x1xf32>
    %cst_23 = arith.constant 1.000000e+00 : f32
    %55 = vector.broadcast %cst_23 : f32 to vector<32x1xf32>
    %56 = arith.divf %55, %54 : vector<32x1xf32>
    %57 = vector.broadcast %56 : vector<32x1xf32> to vector<32x32xf32>
    %58 = arith.mulf %38, %57 : vector<32x32xf32>
    %59 = arith.mulf %52, %58 : vector<32x32xf32>
    %60 = vector.extract_strided_slice %6 {offsets = [0, 128], sizes = [32, 128], strides = [1, 1]} : vector<32x256xf32> to vector<32x128xf32>
    %cst_24 = arith.constant dense<0.000000e+00> : vector<32x128xf32>
    %61 = tpu.matmul %59, %60, %cst_24 {dimension_numbers = #tpu.dot_dimension_numbers<[1], [0], [0], [1], [0, 0, 1, 1], [], []>} : vector<32x32xf32>, vector<32x128xf32>, vector<32x128xf32> -> vector<32x128xf32>
    %62 = arith.addf %36, %61 : vector<32x128xf32>
    %cst_25 = arith.constant 0.000000e+00 : f32
    %63 = vector.broadcast %cst_25 : f32 to vector<32x128xf32>
    %64 = arith.maximumf %62, %63 : vector<32x128xf32>
    %c0_26 = arith.constant 0 : index
    %c0_27 = arith.constant 0 : index
    %65 = vector.load %arg4[%c0_26, %c0_27] : memref<96x128xf32, #tpu.memory_space<vmem>>, vector<32x128xf32>
    tpu.vector_store %arg4[%c0_26, %c0_27], %64 {strides = array<i32>} : memref<96x128xf32, #tpu.memory_space<vmem>>, vector<32x128xf32>,
    %66 = vector.extract_strided_slice %2 {offsets = [32, 0], sizes = [32, 256], strides = [1, 1]} : vector<96x256xf32> to vector<32x256xf32>
    %67 = vector.extract_strided_slice %5 {offsets = [32, 4], sizes = [32, 4], strides = [1, 1]} : vector<96x12xf32> to vector<32x4xf32>
    %68 = vector.extract_strided_slice %67 {offsets = [0, 1], sizes = [32, 1], strides = [1, 1]} : vector<32x4xf32> to vector<32x1xf32>
    %69 = vector.extract_strided_slice %67 {offsets = [0, 3], sizes = [32, 1], strides = [1, 1]} : vector<32x4xf32> to vector<32x1xf32>
    %70 = tpu.concatenate %68, %69 in 1 : vector<32x1xf32>, vector<32x1xf32> -> vector<32x2xf32>
    %71 = tpu.transpose %70, [1, 0] : vector<32x2xf32> -> vector<2x32xf32>
    %c1_28 = arith.constant 1 : index
    %c0_29 = arith.constant 0 : index
    %c0_30 = arith.constant 0 : index
    %c0_31 = arith.constant 0 : index
    %72 = vector.load %arg2[%c1_28, %c0_29, %c0_30, %c0_31] : memref<3x2x32x32xf32, #tpu.memory_space<vmem>>, vector<1x1x32x32xf32>
    %73 = vector.shape_cast %72 : vector<1x1x32x32xf32> to vector<32x32xf32>
    %cst_32 = arith.constant 0.000000e+00 : f32
    %74 = vector.broadcast %cst_32 : f32 to vector<32x32xf32>
    %75 = arith.cmpf one, %73, %74 : vector<32x32xf32>
    %76 = vector.extract_strided_slice %67 {offsets = [0, 0], sizes = [32, 1], strides = [1, 1]} : vector<32x4xf32> to vector<32x1xf32>
    %77 = vector.extract_strided_slice %71 {offsets = [0, 0], sizes = [1, 32], strides = [1, 1]} : vector<2x32xf32> to vector<1x32xf32>
    %78 = vector.broadcast %76 : vector<32x1xf32> to vector<32x32xf32>
    %79 = vector.broadcast %77 : vector<1x32xf32> to vector<32x32xf32>
    %80 = arith.addf %78, %79 : vector<32x32xf32>
    %cst_33 = arith.constant -1.000000e+30 : f32
    %81 = vector.broadcast %cst_33 : f32 to vector<32x32xf32>
    %82 = arith.select %75, %80, %81 : vector<32x32xi1>, vector<32x32xf32>
    %cst_34 = arith.constant dense<0xFF800000> : vector<32xf32>
    %83 = vector.multi_reduction <maximumf>, %82, %cst_34 [1] : vector<32x32xf32> to vector<32xf32>
    %84 = vector.shape_cast %83 : vector<32xf32> to vector<32x1xf32>
    %85 = vector.broadcast %84 : vector<32x1xf32> to vector<32x32xf32>
    %86 = arith.subf %82, %85 : vector<32x32xf32>
    %87 = math.exp %86 : vector<32x32xf32>
    %cst_35 = arith.constant dense<0.000000e+00> : vector<32xf32>
    %88 = vector.multi_reduction <add>, %87, %cst_35 [1] : vector<32x32xf32> to vector<32xf32>
    %89 = vector.shape_cast %88 : vector<32xf32> to vector<32x1xf32>
    %cst_36 = arith.constant 1.000000e+00 : f32
    %90 = vector.broadcast %cst_36 : f32 to vector<32x1xf32>
    %91 = arith.divf %90, %89 : vector<32x1xf32>
    %92 = vector.broadcast %91 : vector<32x1xf32> to vector<32x32xf32>
    %93 = arith.mulf %73, %92 : vector<32x32xf32>
    %94 = arith.mulf %87, %93 : vector<32x32xf32>
    %95 = vector.extract_strided_slice %66 {offsets = [0, 0], sizes = [32, 128], strides = [1, 1]} : vector<32x256xf32> to vector<32x128xf32>
    %cst_37 = arith.constant dense<0.000000e+00> : vector<32x128xf32>
    %96 = tpu.matmul %94, %95, %cst_37 {dimension_numbers = #tpu.dot_dimension_numbers<[1], [0], [0], [1], [0, 0, 1, 1], [], []>} : vector<32x32xf32>, vector<32x128xf32>, vector<32x128xf32> -> vector<32x128xf32>
    %c1_38 = arith.constant 1 : index
    %c1_39 = arith.constant 1 : index
    %c0_40 = arith.constant 0 : index
    %c0_41 = arith.constant 0 : index
    %97 = vector.load %arg2[%c1_38, %c1_39, %c0_40, %c0_41] : memref<3x2x32x32xf32, #tpu.memory_space<vmem>>, vector<1x1x32x32xf32>
    %98 = vector.shape_cast %97 : vector<1x1x32x32xf32> to vector<32x32xf32>
    %cst_42 = arith.constant 0.000000e+00 : f32
    %99 = vector.broadcast %cst_42 : f32 to vector<32x32xf32>
    %100 = arith.cmpf one, %98, %99 : vector<32x32xf32>
    %101 = vector.extract_strided_slice %67 {offsets = [0, 2], sizes = [32, 1], strides = [1, 1]} : vector<32x4xf32> to vector<32x1xf32>
    %102 = vector.extract_strided_slice %71 {offsets = [1, 0], sizes = [1, 32], strides = [1, 1]} : vector<2x32xf32> to vector<1x32xf32>
    %103 = vector.broadcast %101 : vector<32x1xf32> to vector<32x32xf32>
    %104 = vector.broadcast %102 : vector<1x32xf32> to vector<32x32xf32>
    %105 = arith.addf %103, %104 : vector<32x32xf32>
    %cst_43 = arith.constant -1.000000e+30 : f32
    %106 = vector.broadcast %cst_43 : f32 to vector<32x32xf32>
    %107 = arith.select %100, %105, %106 : vector<32x32xi1>, vector<32x32xf32>
    %cst_44 = arith.constant dense<0xFF800000> : vector<32xf32>
    %108 = vector.multi_reduction <maximumf>, %107, %cst_44 [1] : vector<32x32xf32> to vector<32xf32>
    %109 = vector.shape_cast %108 : vector<32xf32> to vector<32x1xf32>
    %110 = vector.broadcast %109 : vector<32x1xf32> to vector<32x32xf32>
    %111 = arith.subf %107, %110 : vector<32x32xf32>
    %112 = math.exp %111 : vector<32x32xf32>
    %cst_45 = arith.constant dense<0.000000e+00> : vector<32xf32>
    %113 = vector.multi_reduction <add>, %112, %cst_45 [1] : vector<32x32xf32> to vector<32xf32>
    %114 = vector.shape_cast %113 : vector<32xf32> to vector<32x1xf32>
    %cst_46 = arith.constant 1.000000e+00 : f32
    %115 = vector.broadcast %cst_46 : f32 to vector<32x1xf32>
    %116 = arith.divf %115, %114 : vector<32x1xf32>
    %117 = vector.broadcast %116 : vector<32x1xf32> to vector<32x32xf32>
    %118 = arith.mulf %98, %117 : vector<32x32xf32>
    %119 = arith.mulf %112, %118 : vector<32x32xf32>
    %120 = vector.extract_strided_slice %66 {offsets = [0, 128], sizes = [32, 128], strides = [1, 1]} : vector<32x256xf32> to vector<32x128xf32>
    %cst_47 = arith.constant dense<0.000000e+00> : vector<32x128xf32>
    %121 = tpu.matmul %119, %120, %cst_47 {dimension_numbers = #tpu.dot_dimension_numbers<[1], [0], [0], [1], [0, 0, 1, 1], [], []>} : vector<32x32xf32>, vector<32x128xf32>, vector<32x128xf32> -> vector<32x128xf32>
    %122 = arith.addf %96, %121 : vector<32x128xf32>
    %cst_48 = arith.constant 0.000000e+00 : f32
    %123 = vector.broadcast %cst_48 : f32 to vector<32x128xf32>
    %124 = arith.maximumf %122, %123 : vector<32x128xf32>
    %c32 = arith.constant 32 : index
    %c0_49 = arith.constant 0 : index
    %125 = vector.load %arg4[%c32, %c0_49] : memref<96x128xf32, #tpu.memory_space<vmem>>, vector<32x128xf32>
    tpu.vector_store %arg4[%c32, %c0_49], %124 {strides = array<i32>} : memref<96x128xf32, #tpu.memory_space<vmem>>, vector<32x128xf32>,
    %126 = vector.extract_strided_slice %2 {offsets = [64, 0], sizes = [32, 256], strides = [1, 1]} : vector<96x256xf32> to vector<32x256xf32>
    %127 = vector.extract_strided_slice %5 {offsets = [64, 8], sizes = [32, 4], strides = [1, 1]} : vector<96x12xf32> to vector<32x4xf32>
    %128 = vector.extract_strided_slice %127 {offsets = [0, 1], sizes = [32, 1], strides = [1, 1]} : vector<32x4xf32> to vector<32x1xf32>
    %129 = vector.extract_strided_slice %127 {offsets = [0, 3], sizes = [32, 1], strides = [1, 1]} : vector<32x4xf32> to vector<32x1xf32>
    %130 = tpu.concatenate %128, %129 in 1 : vector<32x1xf32>, vector<32x1xf32> -> vector<32x2xf32>
    %131 = tpu.transpose %130, [1, 0] : vector<32x2xf32> -> vector<2x32xf32>
    %c2 = arith.constant 2 : index
    %c0_50 = arith.constant 0 : index
    %c0_51 = arith.constant 0 : index
    %c0_52 = arith.constant 0 : index
    %132 = vector.load %arg2[%c2, %c0_50, %c0_51, %c0_52] : memref<3x2x32x32xf32, #tpu.memory_space<vmem>>, vector<1x1x32x32xf32>
    %133 = vector.shape_cast %132 : vector<1x1x32x32xf32> to vector<32x32xf32>
    %cst_53 = arith.constant 0.000000e+00 : f32
    %134 = vector.broadcast %cst_53 : f32 to vector<32x32xf32>
    %135 = arith.cmpf one, %133, %134 : vector<32x32xf32>
    %136 = vector.extract_strided_slice %127 {offsets = [0, 0], sizes = [32, 1], strides = [1, 1]} : vector<32x4xf32> to vector<32x1xf32>
    %137 = vector.extract_strided_slice %131 {offsets = [0, 0], sizes = [1, 32], strides = [1, 1]} : vector<2x32xf32> to vector<1x32xf32>
    %138 = vector.broadcast %136 : vector<32x1xf32> to vector<32x32xf32>
    %139 = vector.broadcast %137 : vector<1x32xf32> to vector<32x32xf32>
    %140 = arith.addf %138, %139 : vector<32x32xf32>
    %cst_54 = arith.constant -1.000000e+30 : f32
    %141 = vector.broadcast %cst_54 : f32 to vector<32x32xf32>
    %142 = arith.select %135, %140, %141 : vector<32x32xi1>, vector<32x32xf32>
    %cst_55 = arith.constant dense<0xFF800000> : vector<32xf32>
    %143 = vector.multi_reduction <maximumf>, %142, %cst_55 [1] : vector<32x32xf32> to vector<32xf32>
    %144 = vector.shape_cast %143 : vector<32xf32> to vector<32x1xf32>
    %145 = vector.broadcast %144 : vector<32x1xf32> to vector<32x32xf32>
    %146 = arith.subf %142, %145 : vector<32x32xf32>
    %147 = math.exp %146 : vector<32x32xf32>
    %cst_56 = arith.constant dense<0.000000e+00> : vector<32xf32>
    %148 = vector.multi_reduction <add>, %147, %cst_56 [1] : vector<32x32xf32> to vector<32xf32>
    %149 = vector.shape_cast %148 : vector<32xf32> to vector<32x1xf32>
    %cst_57 = arith.constant 1.000000e+00 : f32
    %150 = vector.broadcast %cst_57 : f32 to vector<32x1xf32>
    %151 = arith.divf %150, %149 : vector<32x1xf32>
    %152 = vector.broadcast %151 : vector<32x1xf32> to vector<32x32xf32>
    %153 = arith.mulf %133, %152 : vector<32x32xf32>
    %154 = arith.mulf %147, %153 : vector<32x32xf32>
    %155 = vector.extract_strided_slice %126 {offsets = [0, 0], sizes = [32, 128], strides = [1, 1]} : vector<32x256xf32> to vector<32x128xf32>
    %cst_58 = arith.constant dense<0.000000e+00> : vector<32x128xf32>
    %156 = tpu.matmul %154, %155, %cst_58 {dimension_numbers = #tpu.dot_dimension_numbers<[1], [0], [0], [1], [0, 0, 1, 1], [], []>} : vector<32x32xf32>, vector<32x128xf32>, vector<32x128xf32> -> vector<32x128xf32>
    %c2_59 = arith.constant 2 : index
    %c1_60 = arith.constant 1 : index
    %c0_61 = arith.constant 0 : index
    %c0_62 = arith.constant 0 : index
    %157 = vector.load %arg2[%c2_59, %c1_60, %c0_61, %c0_62] : memref<3x2x32x32xf32, #tpu.memory_space<vmem>>, vector<1x1x32x32xf32>
    %158 = vector.shape_cast %157 : vector<1x1x32x32xf32> to vector<32x32xf32>
    %cst_63 = arith.constant 0.000000e+00 : f32
    %159 = vector.broadcast %cst_63 : f32 to vector<32x32xf32>
    %160 = arith.cmpf one, %158, %159 : vector<32x32xf32>
    %161 = vector.extract_strided_slice %127 {offsets = [0, 2], sizes = [32, 1], strides = [1, 1]} : vector<32x4xf32> to vector<32x1xf32>
    %162 = vector.extract_strided_slice %131 {offsets = [1, 0], sizes = [1, 32], strides = [1, 1]} : vector<2x32xf32> to vector<1x32xf32>
    %163 = vector.broadcast %161 : vector<32x1xf32> to vector<32x32xf32>
    %164 = vector.broadcast %162 : vector<1x32xf32> to vector<32x32xf32>
    %165 = arith.addf %163, %164 : vector<32x32xf32>
    %cst_64 = arith.constant -1.000000e+30 : f32
    %166 = vector.broadcast %cst_64 : f32 to vector<32x32xf32>
    %167 = arith.select %160, %165, %166 : vector<32x32xi1>, vector<32x32xf32>
    %cst_65 = arith.constant dense<0xFF800000> : vector<32xf32>
    %168 = vector.multi_reduction <maximumf>, %167, %cst_65 [1] : vector<32x32xf32> to vector<32xf32>
    %169 = vector.shape_cast %168 : vector<32xf32> to vector<32x1xf32>
    %170 = vector.broadcast %169 : vector<32x1xf32> to vector<32x32xf32>
    %171 = arith.subf %167, %170 : vector<32x32xf32>
    %172 = math.exp %171 : vector<32x32xf32>
    %cst_66 = arith.constant dense<0.000000e+00> : vector<32xf32>
    %173 = vector.multi_reduction <add>, %172, %cst_66 [1] : vector<32x32xf32> to vector<32xf32>
    %174 = vector.shape_cast %173 : vector<32xf32> to vector<32x1xf32>
    %cst_67 = arith.constant 1.000000e+00 : f32
    %175 = vector.broadcast %cst_67 : f32 to vector<32x1xf32>
    %176 = arith.divf %175, %174 : vector<32x1xf32>
    %177 = vector.broadcast %176 : vector<32x1xf32> to vector<32x32xf32>
    %178 = arith.mulf %158, %177 : vector<32x32xf32>
    %179 = arith.mulf %172, %178 : vector<32x32xf32>
    %180 = vector.extract_strided_slice %126 {offsets = [0, 128], sizes = [32, 128], strides = [1, 1]} : vector<32x256xf32> to vector<32x128xf32>
    %cst_68 = arith.constant dense<0.000000e+00> : vector<32x128xf32>
    %181 = tpu.matmul %179, %180, %cst_68 {dimension_numbers = #tpu.dot_dimension_numbers<[1], [0], [0], [1], [0, 0, 1, 1], [], []>} : vector<32x32xf32>, vector<32x128xf32>, vector<32x128xf32> -> vector<32x128xf32>
    %182 = arith.addf %156, %181 : vector<32x128xf32>
    %cst_69 = arith.constant 0.000000e+00 : f32
    %183 = vector.broadcast %cst_69 : f32 to vector<32x128xf32>
    %184 = arith.maximumf %182, %183 : vector<32x128xf32>
    %c64 = arith.constant 64 : index
    %c0_70 = arith.constant 0 : index
    %185 = vector.load %arg4[%c64, %c0_70] : memref<96x128xf32, #tpu.memory_space<vmem>>, vector<32x128xf32>
    tpu.vector_store %arg4[%c64, %c0_70], %184 {strides = array<i32>} : memref<96x128xf32, #tpu.memory_space<vmem>>, vector<32x128xf32>,
    return
  }
}

</mosaic_0001>

<llo_original>
// kernel: tpu_custom_call.1
$region0: #{tpu_custom_call.1}
  #allocation0 [shape = 'u32[]', space=smem, size = 0x4, offset = 0x4, fixed_abs, tag = 'smem constant byte address 0x4 - core index']
  #allocation1 [shape = 'u32[144,128]{1,0:T(1,128)}', space=vmem, size = 0x12000, scoped, tag = 'internal scratch']
  %s0 = inlined_call_operand.vmem [shape: f32[96,48], index: 0, kind: input, shape index: {}]
  %s1 = inlined_call_operand.vmem [shape: f32[48,256], index: 1, kind: input, shape index: {}]
  %s2 = inlined_call_operand.vmem [shape: f32[3,2,32,32], index: 2, kind: input, shape index: {}]
  %s3 = inlined_call_operand.vmem [shape: f32[256,12], index: 3, kind: input, shape index: {}]
  %s4 = inlined_call_operand.hbm [shape: f32[96,128], index: 4, kind: output, shape index: {}]
  %s5 = sld [smem:[#allocation0]]
  $region26: #{tpu_custom_call.1} parent=0
    _
  %s7 = ssub.s32 1, %s5
  %s8 = scalar_select 0, %s7, %s5
  $region1: #{tpu_custom_call.1} parent=0
    #allocation2 [shape = 'u8[49152]{0}', space=vmem, size = 0xc000, scoped, tag = 'output window, operand 0, single buffered']
    #allocation3 [shape = 's32[1]{0}', space=sflag, size = 0x4, scoped, tag = 'scoped memory for tpu_custom_call.1']
    %9 = vsyncpa [#allocation3], 0
    // Predicated region
    $region2: #{tpu_custom_call.1} parent=1 // pred_check
      _
    $region3: #{tpu_custom_call.1} parent=1 // pred_check_branch
      %11 = sbr.rel (0) target = $region5
    $region4: #{tpu_custom_call.1} parent=1 // pred_region
      _
    $region5: #{tpu_custom_call.1} parent=1 // pred_fallthru
      _
    // Predicated region
    $region6: #{tpu_custom_call.1} parent=1 // pred_check
      _
    $region7: #{tpu_custom_call.1} parent=1 // pred_check_branch
      %13 = sbr.rel (0) target = $region9
    $region8: #{tpu_custom_call.1} parent=1 // pred_region
      _
    $region9: #{tpu_custom_call.1} parent=1 // pred_fallthru
      _
    // Predicated region
    $region10: #{tpu_custom_call.1} parent=1 // pred_check
      _
    $region11: #{tpu_custom_call.1} parent=1 // pred_check_branch
      %15 = sbr.rel (0) target = $region13
    $region12: #{tpu_custom_call.1} parent=1 // pred_region
      _
    $region13: #{tpu_custom_call.1} parent=1 // pred_fallthru
      _
    // Predicated region
    $region14: #{tpu_custom_call.1} parent=1 // pred_check
      _
    $region15: #{tpu_custom_call.1} parent=1 // pred_check_branch
      %17 = sbr.rel (0) target = $region17
    $region16: #{tpu_custom_call.1} parent=1 // pred_region
      _
    $region17: #{tpu_custom_call.1} parent=1 // pred_fallthru
      _
    %v18 = vld [vmem:[%s0] sm:$0xff]
    %v19 = vld [vmem:[%s0 + $0x8] sm:$0xff]
    %v20 = vld [vmem:[%s0 + $0x10] sm:$0xff]
    %v21 = vld [vmem:[%s0 + $0x18] sm:$0xff]
    %v22 = vld [vmem:[%s0 + $0x20] sm:$0xff]
    %v23 = vld [vmem:[%s0 + $0x28] sm:$0xff]
    %v24 = vld [vmem:[%s0 + $0x30] sm:$0xff]
    %v25 = vld [vmem:[%s0 + $0x38] sm:$0xff]
    %v26 = vld [vmem:[%s0 + $0x40] sm:$0xff]
    %v27 = vld [vmem:[%s0 + $0x48] sm:$0xff]
    %v28 = vld [vmem:[%s0 + $0x50] sm:$0xff]
    %v29 = vld [vmem:[%s0 + $0x58] sm:$0xff]
    %v30 = vld [vmem:[%s1] sm:$0xff]
    %v31 = vld [vmem:[%s1 + $0x8] sm:$0xff]
    %v32 = vld [vmem:[%s1 + $0x10] sm:$0xff]
    %v33 = vld [vmem:[%s1 + $0x18] sm:$0xff]
    %v34 = vld [vmem:[%s1 + $0x20] sm:$0xff]
    %v35 = vld [vmem:[%s1 + $0x28] sm:$0xff]
    %v36 = vld [vmem:[%s1 + $0x30] sm:$0xff]
    %v37 = vld [vmem:[%s1 + $0x38] sm:$0xff]
    %v38 = vld [vmem:[%s1 + $0x40] sm:$0xff]
    %v39 = vld [vmem:[%s1 + $0x48] sm:$0xff]
    %v40 = vld [vmem:[%s1 + $0x50] sm:$0xff]
    %v41 = vld [vmem:[%s1 + $0x58] sm:$0xff]
    %vm42 = vcmask 392192
    %v44 = vsel %vm42, %v18, 0
    %v47 = vsel %vm42, %v19, 0
    %v50 = vsel %vm42, %v20, 0
    %v53 = vsel %vm42, %v21, 0
    %v56 = vsel %vm42, %v22, 0
    %v59 = vsel %vm42, %v23, 0
    %v62 = vsel %vm42, %v24, 0
    %v65 = vsel %vm42, %v25, 0
    %v68 = vsel %vm42, %v26, 0
    %v71 = vsel %vm42, %v27, 0
    %v74 = vsel %vm42, %v28, 0
    %v77 = vsel %vm42, %v29, 0
    %79 = vmatprep.subr.mxu0 %v31
    %80 = vmatpush1.msra.mxu0 %v30
    %81 = vmatprep.subr.mxu0 %v33
    %82 = vmatpush1.msra.mxu0 %v32
    %83 = vmatprep.subr.mxu0 %v35
    %84 = vmatpush1.msra.mxu0 %v34
    %85 = vmatprep.subr.mxu0 %v37
    %86 = vmatpush1.msra.mxu0 %v36
    %87 = vmatprep.subr.mxu0 %v39
    %88 = vmatpush1.msra.mxu0 %v38
    %89 = vmatprep.subr.mxu0 %v41
    %90 = vmatpush1.msra.mxu0 %v40
    %91 = vmatprep.subr.mxu0 0.0
    %92 = vmatpush1.msra.mxu0 0.0
    %93 = vmatprep.subr.mxu0 0.0
    %94 = vmatpush1.msra.mxu0 0.0
    %95 = vmatprep.subr.mxu0 0.0
    %96 = vmatpush1.msra.mxu0 0.0
    %97 = vmatprep.subr.mxu0 0.0
    %98 = vmatpush1.msra.mxu0 0.0
    %99 = vmatprep.subr.mxu0 0.0
    %100 = vmatpush1.msra.mxu0 0.0
    %101 = vmatprep.subr.mxu0 0.0
    %102 = vmatpush1.msra.mxu0 0.0
    %103 = vmatprep.subr.mxu0 0.0
    %104 = vmatpush1.msra.mxu0 0.0
    %105 = vmatprep.subr.mxu0 0.0
    %106 = vmatpush1.msra.mxu0 0.0
    %107 = vmatprep.subr.mxu0 0.0
    %108 = vmatpush1.msra.mxu0 0.0
    %109 = vmatprep.subr.mxu0 0.0
    %110 = vmatpush1.msra.mxu0 0.0
    %111 = vmatprep.subr.mxu0 0.0
    %112 = vmatpush1.msra.mxu0 0.0
    %113 = vmatprep.subr.mxu0 0.0
    %114 = vmatpush1.msra.mxu0 0.0
    %115 = vmatprep.subr.mxu0 0.0
    %116 = vmatpush1.msra.mxu0 0.0
    %117 = vmatprep.subr.mxu0 0.0
    %118 = vmatpush1.msra.mxu0 0.0
    %119 = vmatprep.subr.mxu0 0.0
    %120 = vmatpush1.msra.mxu0 0.0
    %121 = vmatprep.subr.mxu0 0.0
    %122 = vmatpush1.msra.mxu0 0.0
    %123 = vmatprep.subr.mxu0 0.0
    %124 = vmatpush1.msra.mxu0 0.0
    %125 = vmatprep.subr.mxu0 0.0
    %126 = vmatpush1.msra.mxu0 0.0
    %127 = vmatprep.subr.mxu0 0.0
    %128 = vmatpush1.msra.mxu0 0.0
    %129 = vmatprep.subr.mxu0 0.0
    %130 = vmatpush1.msra.mxu0 0.0
    %131 = vmatprep.subr.mxu0 0.0
    %132 = vmatpush1.msra.mxu0 0.0
    %133 = vmatprep.subr.mxu0 0.0
    %134 = vmatpush1.msra.mxu0 0.0
    %135 = vmatprep.subr.mxu0 0.0
    %136 = vmatpush1.msra.mxu0 0.0
    %137 = vmatprep.subr.mxu0 0.0
    %138 = vmatpush1.msra.mxu0 0.0
    %139 = vmatprep.subr.mxu0 0.0
    %140 = vmatpush1.msra.mxu0 0.0
    %141 = vmatprep.subr.mxu0 0.0
    %142 = vmatpush1.msra.mxu0 0.0
    %143 = vmatprep.mubr.f32.mxu0 0.0
    %144 = vmatmul.mubr.f32.gmra.mrb[0].mxu0 %v44
    %v145 = vpop.f32.mrb[0].mxu0
    %v146 = vadd.f32 0.0, %v145
    %v147 = vpop.f32.mrb[0].mxu0
    %v148 = vadd.f32 0.0, %v147
    %149 = vmatprep.mubr.f32.mxu0 0.0
    %150 = vmatmul.mubr.f32.gmra.mrb[0].mxu0 %v47
    %v151 = vpop.f32.mrb[0].mxu0
    %v152 = vadd.f32 0.0, %v151
    %v153 = vpop.f32.mrb[0].mxu0
    %v154 = vadd.f32 0.0, %v153
    %155 = vmatprep.mubr.f32.mxu0 0.0
    %156 = vmatmul.mubr.f32.gmra.mrb[0].mxu0 %v50
    %v157 = vpop.f32.mrb[0].mxu0
    %v158 = vadd.f32 0.0, %v157
    %v159 = vpop.f32.mrb[0].mxu0
    %v160 = vadd.f32 0.0, %v159
    %161 = vmatprep.mubr.f32.mxu0 0.0
    %162 = vmatmul.mubr.f32.gmra.mrb[0].mxu0 %v53
    %v163 = vpop.f32.mrb[0].mxu0
    %v164 = vadd.f32 0.0, %v163
    %v165 = vpop.f32.mrb[0].mxu0
    %v166 = vadd.f32 0.0, %v165
    %167 = vmatprep.mubr.f32.mxu0 0.0
    %168 = vmatmul.mubr.f32.gmra.mrb[0].mxu0 %v56
    %v169 = vpop.f32.mrb[0].mxu0
    %v170 = vadd.f32 0.0, %v169
    %v171 = vpop.f32.mrb[0].mxu0
    %v172 = vadd.f32 0.0, %v171
    %173 = vmatprep.mubr.f32.mxu0 0.0
    %174 = vmatmul.mubr.f32.gmra.mrb[0].mxu0 %v59
    %v175 = vpop.f32.mrb[0].mxu0
    %v176 = vadd.f32 0.0, %v175
    %v177 = vpop.f32.mrb[0].mxu0
    %v178 = vadd.f32 0.0, %v177
    %179 = vmatprep.mubr.f32.mxu0 0.0
    %180 = vmatmul.mubr.f32.gmra.mrb[0].mxu0 %v62
    %v181 = vpop.f32.mrb[0].mxu0
    %v182 = vadd.f32 0.0, %v181
    %v183 = vpop.f32.mrb[0].mxu0
    %v184 = vadd.f32 0.0, %v183
    %185 = vmatprep.mubr.f32.mxu0 0.0
    %186 = vmatmul.mubr.f32.gmra.mrb[0].mxu0 %v65
    %v187 = vpop.f32.mrb[0].mxu0
    %v188 = vadd.f32 0.0, %v187
    %v189 = vpop.f32.mrb[0].mxu0
    %v190 = vadd.f32 0.0, %v189
    %191 = vmatprep.mubr.f32.mxu0 0.0
    %192 = vmatmul.mubr.f32.gmra.mrb[0].mxu0 %v68
    %v193 = vpop.f32.mrb[0].mxu0
    %v194 = vadd.f32 0.0, %v193
    %v195 = vpop.f32.mrb[0].mxu0
    %v196 = vadd.f32 0.0, %v195
    %197 = vmatprep.mubr.f32.mxu0 0.0
    %198 = vmatmul.mubr.f32.gmra.mrb[0].mxu0 %v71
    %v199 = vpop.f32.mrb[0].mxu0
    %v200 = vadd.f32 0.0, %v199
    %v201 = vpop.f32.mrb[0].mxu0
    %v202 = vadd.f32 0.0, %v201
    %203 = vmatprep.mubr.f32.mxu0 0.0
    %204 = vmatmul.mubr.f32.gmra.mrb[0].mxu0 %v74
    %v205 = vpop.f32.mrb[0].mxu0
    %v206 = vadd.f32 0.0, %v205
    %v207 = vpop.f32.mrb[0].mxu0
    %v208 = vadd.f32 0.0, %v207
    %209 = vmatprep.mubr.f32.mxu0 0.0
    %210 = vmatmul.mubr.f32.gmra.mrb[0].mxu0 %v77
    %v211 = vpop.f32.mrb[0].mxu0
    %v212 = vadd.f32 0.0, %v211
    %v213 = vpop.f32.mrb[0].mxu0
    %v214 = vadd.f32 0.0, %v213
    %215 = vdwg.mxu0
    %v216 = vand.u32 2147483647, %v146
    %v217 = vand.u32 2147483647, %v148
    %v218 = vand.u32 2147483647, %v152
    %v219 = vand.u32 2147483647, %v154
    %v220 = vand.u32 2147483647, %v158
    %v221 = vand.u32 2147483647, %v160
    %v222 = vand.u32 2147483647, %v164
    %v223 = vand.u32 2147483647, %v166
    %v224 = vand.u32 2147483647, %v170
    %v225 = vand.u32 2147483647, %v172
    %v226 = vand.u32 2147483647, %v176
    %v227 = vand.u32 2147483647, %v178
    %v228 = vand.u32 2147483647, %v182
    %v229 = vand.u32 2147483647, %v184
    %v230 = vand.u32 2147483647, %v188
    %v231 = vand.u32 2147483647, %v190
    %v232 = vand.u32 2147483647, %v194
    %v233 = vand.u32 2147483647, %v196
    %v234 = vand.u32 2147483647, %v200
    %v235 = vand.u32 2147483647, %v202
    %v236 = vand.u32 2147483647, %v206
    %v237 = vand.u32 2147483647, %v208
    %v238 = vand.u32 2147483647, %v212
    %v239 = vand.u32 2147483647, %v214
    %v240 = vld [vmem:[%s3] sm:$0xff]
    %v241 = vld [vmem:[%s3 + $0x8] sm:$0xff]
    %v242 = vld [vmem:[%s3 + $0x10] sm:$0xff]
    %v243 = vld [vmem:[%s3 + $0x18] sm:$0xff]
    %v244 = vld [vmem:[%s3 + $0x20] sm:$0xff]
    %v245 = vld [vmem:[%s3 + $0x28] sm:$0xff]
    %v246 = vld [vmem:[%s3 + $0x30] sm:$0xff]
    %v247 = vld [vmem:[%s3 + $0x38] sm:$0xff]
    %v248 = vld [vmem:[%s3 + $0x40] sm:$0xff]
    %v249 = vld [vmem:[%s3 + $0x48] sm:$0xff]
    %v250 = vld [vmem:[%s3 + $0x50] sm:$0xff]
    %v251 = vld [vmem:[%s3 + $0x58] sm:$0xff]
    %v252 = vld [vmem:[%s3 + $0x60] sm:$0xff]
    %v253 = vld [vmem:[%s3 + $0x68] sm:$0xff]
    %v254 = vld [vmem:[%s3 + $0x70] sm:$0xff]
    %v255 = vld [vmem:[%s3 + $0x78] sm:$0xff]
    %v256 = vld [vmem:[%s3 + $0x80] sm:$0xff]
    %v257 = vld [vmem:[%s3 + $0x88] sm:$0xff]
    %v258 = vld [vmem:[%s3 + $0x90] sm:$0xff]
    %v259 = vld [vmem:[%s3 + $0x98] sm:$0xff]
    %v260 = vld [vmem:[%s3 + $0xa0] sm:$0xff]
    %v261 = vld [vmem:[%s3 + $0xa8] sm:$0xff]
    %v262 = vld [vmem:[%s3 + $0xb0] sm:$0xff]
    %v263 = vld [vmem:[%s3 + $0xb8] sm:$0xff]
    %v264 = vld [vmem:[%s3 + $0xc0] sm:$0xff]
    %v265 = vld [vmem:[%s3 + $0xc8] sm:$0xff]
    %v266 = vld [vmem:[%s3 + $0xd0] sm:$0xff]
    %v267 = vld [vmem:[%s3 + $0xd8] sm:$0xff]
    %v268 = vld [vmem:[%s3 + $0xe0] sm:$0xff]
    %v269 = vld [vmem:[%s3 + $0xe8] sm:$0xff]
    %v270 = vld [vmem:[%s3 + $0xf0] sm:$0xff]
    %v271 = vld [vmem:[%s3 + $0xf8] sm:$0xff]
    %272 = vmatprep.subr.mxu0 0.0
    %273 = vmatpush1.msra.mxu0 %v240
    %274 = vmatprep.subr.mxu0 0.0
    %275 = vmatpush1.msra.mxu0 %v241
    %276 = vmatprep.subr.mxu0 0.0
    %277 = vmatpush1.msra.mxu0 %v242
    %278 = vmatprep.subr.mxu0 0.0
    %279 = vmatpush1.msra.mxu0 %v243
    %280 = vmatprep.subr.mxu0 0.0
    %281 = vmatpush1.msra.mxu0 %v244
    %282 = vmatprep.subr.mxu0 0.0
    %283 = vmatpush1.msra.mxu0 %v245
    %284 = vmatprep.subr.mxu0 0.0
    %285 = vmatpush1.msra.mxu0 %v246
    %286 = vmatprep.subr.mxu0 0.0
    %287 = vmatpush1.msra.mxu0 %v247
    %288 = vmatprep.subr.mxu0 0.0
    %289 = vmatpush1.msra.mxu0 %v248
    %290 = vmatprep.subr.mxu0 0.0
    %291 = vmatpush1.msra.mxu0 %v249
    %292 = vmatprep.subr.mxu0 0.0
    %293 = vmatpush1.msra.mxu0 %v250
    %294 = vmatprep.subr.mxu0 0.0
    %295 = vmatpush1.msra.mxu0 %v251
    %296 = vmatprep.subr.mxu0 0.0
    %297 = vmatpush1.msra.mxu0 %v252
    %298 = vmatprep.subr.mxu0 0.0
    %299 = vmatpush1.msra.mxu0 %v253
    %300 = vmatprep.subr.mxu0 0.0
    %301 = vmatpush1.msra.mxu0 %v254
    %302 = vmatprep.subr.mxu0 0.0
    %303 = vmatpush1.msra.mxu0 %v255
    %304 = vmatprep.subr.mxu0 0.0
    %305 = vmatpush1.msra.mxu0 %v256
    %306 = vmatprep.subr.mxu0 0.0
    %307 = vmatpush1.msra.mxu0 %v257
    %308 = vmatprep.subr.mxu0 0.0
    %309 = vmatpush1.msra.mxu0 %v258
    %310 = vmatprep.subr.mxu0 0.0
    %311 = vmatpush1.msra.mxu0 %v259
    %312 = vmatprep.subr.mxu0 0.0
    %313 = vmatpush1.msra.mxu0 %v260
    %314 = vmatprep.subr.mxu0 0.0
    %315 = vmatpush1.msra.mxu0 %v261
    %316 = vmatprep.subr.mxu0 0.0
    %317 = vmatpush1.msra.mxu0 %v262
    %318 = vmatprep.subr.mxu0 0.0
    %319 = vmatpush1.msra.mxu0 %v263
    %320 = vmatprep.subr.mxu0 0.0
    %321 = vmatpush1.msra.mxu0 %v264
    %322 = vmatprep.subr.mxu0 0.0
    %323 = vmatpush1.msra.mxu0 %v265
    %324 = vmatprep.subr.mxu0 0.0
    %325 = vmatpush1.msra.mxu0 %v266
    %326 = vmatprep.subr.mxu0 0.0
    %327 = vmatpush1.msra.mxu0 %v267
    %328 = vmatprep.subr.mxu0 0.0
    %329 = vmatpush1.msra.mxu0 %v268
    %330 = vmatprep.subr.mxu0 0.0
    %331 = vmatpush1.msra.mxu0 %v269
    %332 = vmatprep.subr.mxu0 0.0
    %333 = vmatpush1.msra.mxu0 %v270
    %334 = vmatprep.subr.mxu0 0.0
    %335 = vmatpush1.msra.mxu0 %v271
    %336 = vmatprep.mubr.f32.mxu0 %v217
    %337 = vmatmul.mubr.f32.gmra.mrb[0].mxu0 %v216
    %v338 = vpop.f32.mrb[0].mxu0
    %v339 = vadd.f32 0.0, %v338
    %v340 = vpop.f32.mrb[0].mxu0
    %341 = vmatprep.mubr.f32.mxu0 %v219
    %342 = vmatmul.mubr.f32.gmra.mrb[0].mxu0 %v218
    %v343 = vpop.f32.mrb[0].mxu0
    %v344 = vadd.f32 0.0, %v343
    %v345 = vpop.f32.mrb[0].mxu0
    %346 = vmatprep.mubr.f32.mxu0 %v221
    %347 = vmatmul.mubr.f32.gmra.mrb[0].mxu0 %v220
    %v348 = vpop.f32.mrb[0].mxu0
    %v349 = vadd.f32 0.0, %v348
    %v350 = vpop.f32.mrb[0].mxu0
    %351 = vmatprep.mubr.f32.mxu0 %v223
    %352 = vmatmul.mubr.f32.gmra.mrb[0].mxu0 %v222
    %v353 = vpop.f32.mrb[0].mxu0
    %v354 = vadd.f32 0.0, %v353
    %v355 = vpop.f32.mrb[0].mxu0
    %356 = vmatprep.mubr.f32.mxu0 %v225
    %357 = vmatmul.mubr.f32.gmra.mrb[0].mxu0 %v224
    %v358 = vpop.f32.mrb[0].mxu0
    %v359 = vadd.f32 0.0, %v358
    %v360 = vpop.f32.mrb[0].mxu0
    %361 = vmatprep.mubr.f32.mxu0 %v227
    %362 = vmatmul.mubr.f32.gmra.mrb[0].mxu0 %v226
    %v363 = vpop.f32.mrb[0].mxu0
    %v364 = vadd.f32 0.0, %v363
    %v365 = vpop.f32.mrb[0].mxu0
    %366 = vmatprep.mubr.f32.mxu0 %v229
    %367 = vmatmul.mubr.f32.gmra.mrb[0].mxu0 %v228
    %v368 = vpop.f32.mrb[0].mxu0
    %v369 = vadd.f32 0.0, %v368
    %v370 = vpop.f32.mrb[0].mxu0
    %371 = vmatprep.mubr.f32.mxu0 %v231
    %372 = vmatmul.mubr.f32.gmra.mrb[0].mxu0 %v230
    %v373 = vpop.f32.mrb[0].mxu0
    %v374 = vadd.f32 0.0, %v373
    %v375 = vpop.f32.mrb[0].mxu0
    %376 = vmatprep.mubr.f32.mxu0 %v233
    %377 = vmatmul.mubr.f32.gmra.mrb[0].mxu0 %v232
    %v378 = vpop.f32.mrb[0].mxu0
    %v379 = vadd.f32 0.0, %v378
    %v380 = vpop.f32.mrb[0].mxu0
    %381 = vmatprep.mubr.f32.mxu0 %v235
    %382 = vmatmul.mubr.f32.gmra.mrb[0].mxu0 %v234
    %v383 = vpop.f32.mrb[0].mxu0
    %v384 = vadd.f32 0.0, %v383
    %v385 = vpop.f32.mrb[0].mxu0
    %386 = vmatprep.mubr.f32.mxu0 %v237
    %387 = vmatmul.mubr.f32.gmra.mrb[0].mxu0 %v236
    %v388 = vpop.f32.mrb[0].mxu0
    %v389 = vadd.f32 0.0, %v388
    %v390 = vpop.f32.mrb[0].mxu0
    %391 = vmatprep.mubr.f32.mxu0 %v239
    %392 = vmatmul.mubr.f32.gmra.mrb[0].mxu0 %v238
    %v393 = vpop.f32.mrb[0].mxu0
    %v394 = vadd.f32 0.0, %v393
    %v395 = vpop.f32.mrb[0].mxu0
    %396 = vdwg.mxu0
    %401 = vrot.lane.b32.xlu0 %v339, 127
    %v402 = vpop.permute.xlu0 %401
    %403 = vrot.lane.b32.xlu0 %v344, 127
    %v404 = vpop.permute.xlu0 %403
    %405 = vrot.lane.b32.xlu0 %v349, 127
    %v406 = vpop.permute.xlu0 %405
    %407 = vrot.lane.b32.xlu0 %v354, 127
    %v408 = vpop.permute.xlu0 %407
    %413 = vrot.lane.b32.xlu0 %v339, 126
    %v414 = vpop.permute.xlu0 %413
    %415 = vrot.lane.b32.xlu0 %v344, 126
    %v416 = vpop.permute.xlu0 %415
    %417 = vrot.lane.b32.xlu0 %v349, 126
    %v418 = vpop.permute.xlu0 %417
    %419 = vrot.lane.b32.xlu0 %v354, 126
    %v420 = vpop.permute.xlu0 %419
    %vm425 = vcmask 7168
    %v426 = vsel %vm425, %v402, %v414
    %v427 = vsel %vm425, %v404, %v416
    %v428 = vsel %vm425, %v406, %v418
    %v429 = vsel %vm425, %v408, %v420
    %430 = vxpose.xlu0.b32.start [1/16] %v426, 128
    %431 = vxpose.xlu0.b32.cont [2/16] %v427, 128
    %432 = vxpose.xlu0.b32.cont [3/16] %v428, 128
    %433 = vxpose.xlu0.b32.cont [4/16] %v429, 128
    %434 = vxpose.xlu0.b32.cont [5/16] 0.0, 128
    %435 = vxpose.xlu0.b32.cont [6/16] 0.0, 128
    %436 = vxpose.xlu0.b32.cont [7/16] 0.0, 128
    %437 = vxpose.xlu0.b32.cont [8/16] 0.0, 128
    %438 = vxpose.xlu0.b32.cont [9/16] 0.0, 128
    %439 = vxpose.xlu0.b32.cont [10/16] 0.0, 128
    %440 = vxpose.xlu0.b32.cont [11/16] 0.0, 128
    %441 = vxpose.xlu0.b32.cont [12/16] 0.0, 128
    %442 = vxpose.xlu0.b32.cont [13/16] 0.0, 128
    %443 = vxpose.xlu0.b32.cont [14/16] 0.0, 128
    %444 = vxpose.xlu0.b32.cont [15/16] 0.0, 128
    %445 = vxpose.xlu0.b32.end [16/16] 0.0, 128
    %v446 = vpop.trf.xlu0
    %v447 = vpop.trf.xlu0
    %v448 = vpop.trf.xlu0
    %v449 = vpop.trf.xlu0
    %v450 = vpop.trf.xlu0
    %v451 = vpop.trf.xlu0
    %v452 = vpop.trf.xlu0
    %v453 = vpop.trf.xlu0
    %v454 = vpop.trf.xlu0
    %v455 = vpop.trf.xlu0
    %v456 = vpop.trf.xlu0
    %v457 = vpop.trf.xlu0
    %v458 = vpop.trf.xlu0
    %v459 = vpop.trf.xlu0
    %v460 = vpop.trf.xlu0
    %v461 = vpop.trf.xlu0
    %v462 = vld [vmem:[%s2] sm:$0xff]
    %v463 = vld [vmem:[%s2 + $0x8] sm:$0xff]
    %v464 = vld [vmem:[%s2 + $0x10] sm:$0xff]
    %v465 = vld [vmem:[%s2 + $0x18] sm:$0xff]
    %vm466 = vcmp.ne.f32.partialorder %v462, 0.0
    %vm467 = vcmp.ne.f32.partialorder %v463, 0.0
    %vm468 = vcmp.ne.f32.partialorder %v464, 0.0
    %vm469 = vcmp.ne.f32.partialorder %v465, 0.0
    %470 = vset.pattern.permute.xlu0 0
    %471 = vperm.xlu0 %470, %v339
    %v472 = vpop.permute.xlu0 %471
    %474 = vset.pattern.permute.xlu0 0
    %475 = vperm.xlu0 %474, %v344
    %v476 = vpop.permute.xlu0 %475
    %478 = vset.pattern.permute.xlu0 0
    %479 = vperm.xlu0 %478, %v349
    %v480 = vpop.permute.xlu0 %479
    %482 = vset.pattern.permute.xlu0 0
    %483 = vperm.xlu0 %482, %v354
    %v484 = vpop.permute.xlu0 %483
    %v486 = vlaneseq
    %v487 = vshrl.u32 %v486, 7
    %v488 = vsub.s32 0, %v487
    %v489 = vrot.slane %v446, %v488
    %v490 = vadd.f32 %v472, %v489
    %v491 = vadd.f32 %v476, %v489
    %v492 = vadd.f32 %v480, %v489
    %v493 = vadd.f32 %v484, %v489
    %v494 = vsel %vm466, %v490, -1e+30
    %v495 = vsel %vm467, %v491, -1e+30
    %v496 = vsel %vm468, %v492, -1e+30
    %v497 = vsel %vm469, %v493, -1e+30
    %vm498 = vcmask 261120
    %v499 = vsel %vm498, %v494, -inf
    %500 = vmax.xlane.f32.xlu0 %v499
    %v501 = vpop.xlane.xlu0 %500
    %v502 = vsel %vm498, %v495, -inf
    %503 = vmax.xlane.f32.xlu0 %v502
    %v504 = vpop.xlane.xlu0 %503
    %v505 = vsel %vm498, %v496, -inf
    %506 = vmax.xlane.f32.xlu0 %v505
    %v507 = vpop.xlane.xlu0 %506
    %v508 = vsel %vm498, %v497, -inf
    %509 = vmax.xlane.f32.xlu0 %v508
    %v510 = vpop.xlane.xlu0 %509
    %v511 = vsub.f32 %v494, %v501
    %v512 = vsub.f32 %v495, %v504
    %v513 = vsub.f32 %v496, %v507
    %v514 = vsub.f32 %v497, %v510
    %v515 = vmul.f32 %v511, 1.442695
    %v516 = vpow.pop %v515
    %v517 = vmul.f32 %v512, 1.442695
    %v518 = vpow.pop %v517
    %v519 = vmul.f32 %v513, 1.442695
    %v520 = vpow.pop %v519
    %v521 = vmul.f32 %v514, 1.442695
    %v522 = vpow.pop %v521
    %v523 = vsel %vm498, %v516, 0.0
    %524 = vadd.xlane.f32.xlu0 %v523
    %v525 = vpop.xlane.xlu0 %524
    %v526 = vsel %vm498, %v518, 0.0
    %527 = vadd.xlane.f32.xlu0 %v526
    %v528 = vpop.xlane.xlu0 %527
    %v529 = vsel %vm498, %v520, 0.0
    %530 = vadd.xlane.f32.xlu0 %v529
    %v531 = vpop.xlane.xlu0 %530
    %v532 = vsel %vm498, %v522, 0.0
    %533 = vadd.xlane.f32.xlu0 %v532
    %v534 = vpop.xlane.xlu0 %533
    %v535 = vrcp.pop %v525
    %v536 = vmul.f32 1.0, %v535
    %v537 = vrcp.pop %v528
    %v538 = vmul.f32 1.0, %v537
    %v539 = vrcp.pop %v531
    %v540 = vmul.f32 1.0, %v539
    %v541 = vrcp.pop %v534
    %v542 = vmul.f32 1.0, %v541
    %v543 = vmul.f32 %v462, %v536
    %v544 = vmul.f32 %v463, %v538
    %v545 = vmul.f32 %v464, %v540
    %v546 = vmul.f32 %v465, %v542
    %v547 = vmul.f32 %v516, %v543
    %v548 = vmul.f32 %v518, %v544
    %v549 = vmul.f32 %v520, %v545
    %v550 = vmul.f32 %v522, %v546
    %s551 = scalar_lea.vmem %s2, 32
    %v552 = vld [vmem:[%s551] sm:$0xff]
    %v553 = vld [vmem:[%s551 + $0x8] sm:$0xff]
    %v554 = vld [vmem:[%s551 + $0x10] sm:$0xff]
    %v555 = vld [vmem:[%s551 + $0x18] sm:$0xff]
    %vm556 = vcmp.ne.f32.partialorder %v552, 0.0
    %vm557 = vcmp.ne.f32.partialorder %v553, 0.0
    %vm558 = vcmp.ne.f32.partialorder %v554, 0.0
    %vm559 = vcmp.ne.f32.partialorder %v555, 0.0
    %560 = vset.pattern.permute.xlu0 2
    %561 = vperm.xlu0 %560, %v339
    %v562 = vpop.permute.xlu0 %561
    %564 = vset.pattern.permute.xlu0 2
    %565 = vperm.xlu0 %564, %v344
    %v566 = vpop.permute.xlu0 %565
    %568 = vset.pattern.permute.xlu0 2
    %569 = vperm.xlu0 %568, %v349
    %v570 = vpop.permute.xlu0 %569
    %572 = vset.pattern.permute.xlu0 2
    %573 = vperm.xlu0 %572, %v354
    %v574 = vpop.permute.xlu0 %573
    %v576 = vlaneseq
    %v577 = vshrl.u32 %v576, 7
    %v578 = vsub.s32 1, %v577
    %v579 = vrot.slane %v446, %v578
    %v580 = vadd.f32 %v562, %v579
    %v581 = vadd.f32 %v566, %v579
    %v582 = vadd.f32 %v570, %v579
    %v583 = vadd.f32 %v574, %v579
    %v584 = vsel %vm556, %v580, -1e+30
    %v585 = vsel %vm557, %v581, -1e+30
    %v586 = vsel %vm558, %v582, -1e+30
    %v587 = vsel %vm559, %v583, -1e+30
    %v588 = vsel %vm498, %v584, -inf
    %589 = vmax.xlane.f32.xlu0 %v588
    %v590 = vpop.xlane.xlu0 %589
    %v591 = vsel %vm498, %v585, -inf
    %592 = vmax.xlane.f32.xlu0 %v591
    %v593 = vpop.xlane.xlu0 %592
    %v594 = vsel %vm498, %v586, -inf
    %595 = vmax.xlane.f32.xlu0 %v594
    %v596 = vpop.xlane.xlu0 %595
    %v597 = vsel %vm498, %v587, -inf
    %598 = vmax.xlane.f32.xlu0 %v597
    %v599 = vpop.xlane.xlu0 %598
    %v600 = vsub.f32 %v584, %v590
    %v601 = vsub.f32 %v585, %v593
    %v602 = vsub.f32 %v586, %v596
    %v603 = vsub.f32 %v587, %v599
    %v604 = vmul.f32 %v600, 1.442695
    %v605 = vpow.pop %v604
    %v606 = vmul.f32 %v601, 1.442695
    %v607 = vpow.pop %v606
    %v608 = vmul.f32 %v602, 1.442695
    %v609 = vpow.pop %v608
    %v610 = vmul.f32 %v603, 1.442695
    %v611 = vpow.pop %v610
    %v612 = vsel %vm498, %v605, 0.0
    %613 = vadd.xlane.f32.xlu0 %v612
    %v614 = vpop.xlane.xlu0 %613
    %v615 = vsel %vm498, %v607, 0.0
    %616 = vadd.xlane.f32.xlu0 %v615
    %v617 = vpop.xlane.xlu0 %616
    %v618 = vsel %vm498, %v609, 0.0
    %619 = vadd.xlane.f32.xlu0 %v618
    %v620 = vpop.xlane.xlu0 %619
    %v621 = vsel %vm498, %v611, 0.0
    %622 = vadd.xlane.f32.xlu0 %v621
    %v623 = vpop.xlane.xlu0 %622
    %v624 = vrcp.pop %v614
    %v625 = vmul.f32 1.0, %v624
    %v626 = vrcp.pop %v617
    %v627 = vmul.f32 1.0, %v626
    %v628 = vrcp.pop %v620
    %v629 = vmul.f32 1.0, %v628
    %v630 = vrcp.pop %v623
    %v631 = vmul.f32 1.0, %v630
    %v632 = vmul.f32 %v552, %v625
    %v633 = vmul.f32 %v553, %v627
    %v634 = vmul.f32 %v554, %v629
    %v635 = vmul.f32 %v555, %v631
    %v636 = vmul.f32 %v605, %v632
    %v637 = vmul.f32 %v607, %v633
    %v638 = vmul.f32 %v609, %v634
    %v639 = vmul.f32 %v611, %v635
    %v641 = vsel %vm498, %v636, 0
    %v644 = vsel %vm498, %v637, 0
    %v647 = vsel %vm498, %v638, 0
    %v650 = vsel %vm498, %v639, 0
    %652 = vmatprep.subr.mxu0 0.0
    %653 = vmatpush1.msra.mxu0 %v148
    %654 = vmatprep.subr.mxu0 0.0
    %655 = vmatpush1.msra.mxu0 %v154
    %656 = vmatprep.subr.mxu0 0.0
    %657 = vmatpush1.msra.mxu0 %v160
    %658 = vmatprep.subr.mxu0 0.0
    %659 = vmatpush1.msra.mxu0 %v166
    %660 = vmatprep.subr.mxu0 0.0
    %661 = vmatpush1.msra.mxu0 0.0
    %662 = vmatprep.subr.mxu0 0.0
    %663 = vmatpush1.msra.mxu0 0.0
    %664 = vmatprep.subr.mxu0 0.0
    %665 = vmatpush1.msra.mxu0 0.0
    %666 = vmatprep.subr.mxu0 0.0
    %667 = vmatpush1.msra.mxu0 0.0
    %668 = vmatprep.subr.mxu0 0.0
    %669 = vmatpush1.msra.mxu0 0.0
    %670 = vmatprep.subr.mxu0 0.0
    %671 = vmatpush1.msra.mxu0 0.0
    %672 = vmatprep.subr.mxu0 0.0
    %673 = vmatpush1.msra.mxu0 0.0
    %674 = vmatprep.subr.mxu0 0.0
    %675 = vmatpush1.msra.mxu0 0.0
    %676 = vmatprep.subr.mxu0 0.0
    %677 = vmatpush1.msra.mxu0 0.0
    %678 = vmatprep.subr.mxu0 0.0
    %679 = vmatpush1.msra.mxu0 0.0
    %680 = vmatprep.subr.mxu0 0.0
    %681 = vmatpush1.msra.mxu0 0.0
    %682 = vmatprep.subr.mxu0 0.0
    %683 = vmatpush1.msra.mxu0 0.0
    %684 = vmatprep.subr.mxu0 0.0
    %685 = vmatpush1.msra.mxu0 0.0
    %686 = vmatprep.subr.mxu0 0.0
    %687 = vmatpush1.msra.mxu0 0.0
    %688 = vmatprep.subr.mxu0 0.0
    %689 = vmatpush1.msra.mxu0 0.0
    %690 = vmatprep.subr.mxu0 0.0
    %691 = vmatpush1.msra.mxu0 0.0
    %692 = vmatprep.subr.mxu0 0.0
    %693 = vmatpush1.msra.mxu0 0.0
    %694 = vmatprep.subr.mxu0 0.0
    %695 = vmatpush1.msra.mxu0 0.0
    %696 = vmatprep.subr.mxu0 0.0
    %697 = vmatpush1.msra.mxu0 0.0
    %698 = vmatprep.subr.mxu0 0.0
    %699 = vmatpush1.msra.mxu0 0.0
    %700 = vmatprep.subr.mxu0 0.0
    %701 = vmatpush1.msra.mxu0 0.0
    %702 = vmatprep.subr.mxu0 0.0
    %703 = vmatpush1.msra.mxu0 0.0
    %704 = vmatprep.subr.mxu0 0.0
    %705 = vmatpush1.msra.mxu0 0.0
    %706 = vmatprep.subr.mxu0 0.0
    %707 = vmatpush1.msra.mxu0 0.0
    %708 = vmatprep.subr.mxu0 0.0
    %709 = vmatpush1.msra.mxu0 0.0
    %710 = vmatprep.subr.mxu0 0.0
    %711 = vmatpush1.msra.mxu0 0.0
    %712 = vmatprep.subr.mxu0 0.0
    %713 = vmatpush1.msra.mxu0 0.0
    %714 = vmatprep.subr.mxu0 0.0
    %715 = vmatpush1.msra.mxu0 0.0
    %716 = vmatprep.mubr.f32.mxu0 0.0
    %717 = vmatmul.mubr.f32.gmra.mrb[0].mxu0 %v641
    %v718 = vpop.f32.mrb[0].mxu0
    %v719 = vadd.f32 0.0, %v718
    %v720 = vpop.f32.mrb[0].mxu0
    %721 = vmatprep.mubr.f32.mxu0 0.0
    %722 = vmatmul.mubr.f32.gmra.mrb[0].mxu0 %v644
    %v723 = vpop.f32.mrb[0].mxu0
    %v724 = vadd.f32 0.0, %v723
    %v725 = vpop.f32.mrb[0].mxu0
    %726 = vmatprep.mubr.f32.mxu0 0.0
    %727 = vmatmul.mubr.f32.gmra.mrb[0].mxu0 %v647
    %v728 = vpop.f32.mrb[0].mxu0
    %v729 = vadd.f32 0.0, %v728
    %v730 = vpop.f32.mrb[0].mxu0
    %731 = vmatprep.mubr.f32.mxu0 0.0
    %732 = vmatmul.mubr.f32.gmra.mrb[0].mxu0 %v650
    %v733 = vpop.f32.mrb[0].mxu0
    %v734 = vadd.f32 0.0, %v733
    %v735 = vpop.f32.mrb[0].mxu0
    %736 = vdwg.mxu0
    %v738 = vsel %vm498, %v547, 0
    %v741 = vsel %vm498, %v548, 0
    %v744 = vsel %vm498, %v549, 0
    %v747 = vsel %vm498, %v550, 0
    %749 = vmatprep.subr.mxu0 0.0
    %750 = vmatpush1.msra.mxu0 %v146
    %751 = vmatprep.subr.mxu0 0.0
    %752 = vmatpush1.msra.mxu0 %v152
    %753 = vmatprep.subr.mxu0 0.0
    %754 = vmatpush1.msra.mxu0 %v158
    %755 = vmatprep.subr.mxu0 0.0
    %756 = vmatpush1.msra.mxu0 %v164
    %757 = vmatprep.subr.mxu0 0.0
    %758 = vmatpush1.msra.mxu0 0.0
    %759 = vmatprep.subr.mxu0 0.0
    %760 = vmatpush1.msra.mxu0 0.0
    %761 = vmatprep.subr.mxu0 0.0
    %762 = vmatpush1.msra.mxu0 0.0
    %763 = vmatprep.subr.mxu0 0.0
    %764 = vmatpush1.msra.mxu0 0.0
    %765 = vmatprep.subr.mxu0 0.0
    %766 = vmatpush1.msra.mxu0 0.0
    %767 = vmatprep.subr.mxu0 0.0
    %768 = vmatpush1.msra.mxu0 0.0
    %769 = vmatprep.subr.mxu0 0.0
    %770 = vmatpush1.msra.mxu0 0.0
    %771 = vmatprep.subr.mxu0 0.0
    %772 = vmatpush1.msra.mxu0 0.0
    %773 = vmatprep.subr.mxu0 0.0
    %774 = vmatpush1.msra.mxu0 0.0
    %775 = vmatprep.subr.mxu0 0.0
    %776 = vmatpush1.msra.mxu0 0.0
    %777 = vmatprep.subr.mxu0 0.0
    %778 = vmatpush1.msra.mxu0 0.0
    %779 = vmatprep.subr.mxu0 0.0
    %780 = vmatpush1.msra.mxu0 0.0
    %781 = vmatprep.subr.mxu0 0.0
    %782 = vmatpush1.msra.mxu0 0.0
    %783 = vmatprep.subr.mxu0 0.0
    %784 = vmatpush1.msra.mxu0 0.0
    %785 = vmatprep.subr.mxu0 0.0
    %786 = vmatpush1.msra.mxu0 0.0
    %787 = vmatprep.subr.mxu0 0.0
    %788 = vmatpush1.msra.mxu0 0.0
    %789 = vmatprep.subr.mxu0 0.0
    %790 = vmatpush1.msra.mxu0 0.0
    %791 = vmatprep.subr.mxu0 0.0
    %792 = vmatpush1.msra.mxu0 0.0
    %793 = vmatprep.subr.mxu0 0.0
    %794 = vmatpush1.msra.mxu0 0.0
    %795 = vmatprep.subr.mxu0 0.0
    %796 = vmatpush1.msra.mxu0 0.0
    %797 = vmatprep.subr.mxu0 0.0
    %798 = vmatpush1.msra.mxu0 0.0
    %799 = vmatprep.subr.mxu0 0.0
    %800 = vmatpush1.msra.mxu0 0.0
    %801 = vmatprep.subr.mxu0 0.0
    %802 = vmatpush1.msra.mxu0 0.0
    %803 = vmatprep.subr.mxu0 0.0
    %804 = vmatpush1.msra.mxu0 0.0
    %805 = vmatprep.subr.mxu0 0.0
    %806 = vmatpush1.msra.mxu0 0.0
    %807 = vmatprep.subr.mxu0 0.0
    %808 = vmatpush1.msra.mxu0 0.0
    %809 = vmatprep.subr.mxu0 0.0
    %810 = vmatpush1.msra.mxu0 0.0
    %811 = vmatprep.subr.mxu0 0.0
    %812 = vmatpush1.msra.mxu0 0.0
    %813 = vmatprep.mubr.f32.mxu0 0.0
    %814 = vmatmul.mubr.f32.gmra.mrb[0].mxu0 %v738
    %v815 = vpop.f32.mrb[0].mxu0
    %v816 = vadd.f32 %v719, %v815
    %v817 = vpop.f32.mrb[0].mxu0
    %818 = vmatprep.mubr.f32.mxu0 0.0
    %819 = vmatmul.mubr.f32.gmra.mrb[0].mxu0 %v741
    %v820 = vpop.f32.mrb[0].mxu0
    %v821 = vadd.f32 %v724, %v820
    %v822 = vpop.f32.mrb[0].mxu0
    %823 = vmatprep.mubr.f32.mxu0 0.0
    %824 = vmatmul.mubr.f32.gmra.mrb[0].mxu0 %v744
    %v825 = vpop.f32.mrb[0].mxu0
    %v826 = vadd.f32 %v729, %v825
    %v827 = vpop.f32.mrb[0].mxu0
    %828 = vmatprep.mubr.f32.mxu0 0.0
    %829 = vmatmul.mubr.f32.gmra.mrb[0].mxu0 %v747
    %v830 = vpop.f32.mrb[0].mxu0
    %v831 = vadd.f32 %v734, %v830
    %v832 = vpop.f32.mrb[0].mxu0
    %833 = vdwg.mxu0
    %v834 = vmax.f32 %v816, 0.0
    %v835 = vmax.f32 %v821, 0.0
    %v836 = vmax.f32 %v826, 0.0
    %v837 = vmax.f32 %v831, 0.0
    %838 = vst [vmem:[#allocation2] sm:$0xff] %v834
    %839 = vst [vmem:[#allocation2 + $0x8] sm:$0xff] %v835
    %840 = vst [vmem:[#allocation2 + $0x10] sm:$0xff] %v836
    %841 = vst [vmem:[#allocation2 + $0x18] sm:$0xff] %v837
    %846 = vrot.lane.b32.xlu0 %v359, 123
    %v847 = vpop.permute.xlu0 %846
    %848 = vrot.lane.b32.xlu0 %v364, 123
    %v849 = vpop.permute.xlu0 %848
    %850 = vrot.lane.b32.xlu0 %v369, 123
    %v851 = vpop.permute.xlu0 %850
    %852 = vrot.lane.b32.xlu0 %v374, 123
    %v853 = vpop.permute.xlu0 %852
    %858 = vrot.lane.b32.xlu0 %v359, 122
    %v859 = vpop.permute.xlu0 %858
    %860 = vrot.lane.b32.xlu0 %v364, 122
    %v861 = vpop.permute.xlu0 %860
    %862 = vrot.lane.b32.xlu0 %v369, 122
    %v863 = vpop.permute.xlu0 %862
    %864 = vrot.lane.b32.xlu0 %v374, 122
    %v865 = vpop.permute.xlu0 %864
    %v870 = vsel %vm425, %v847, %v859
    %v871 = vsel %vm425, %v849, %v861
    %v872 = vsel %vm425, %v851, %v863
    %v873 = vsel %vm425, %v853, %v865
    %874 = vxpose.xlu0.b32.start [1/16] %v870, 128
    %875 = vxpose.xlu0.b32.cont [2/16] %v871, 128
    %876 = vxpose.xlu0.b32.cont [3/16] %v872, 128
    %877 = vxpose.xlu0.b32.cont [4/16] %v873, 128
    %878 = vxpose.xlu0.b32.cont [5/16] 0.0, 128
    %879 = vxpose.xlu0.b32.cont [6/16] 0.0, 128
    %880 = vxpose.xlu0.b32.cont [7/16] 0.0, 128
    %881 = vxpose.xlu0.b32.cont [8/16] 0.0, 128
    %882 = vxpose.xlu0.b32.cont [9/16] 0.0, 128
    %883 = vxpose.xlu0.b32.cont [10/16] 0.0, 128
    %884 = vxpose.xlu0.b32.cont [11/16] 0.0, 128
    %885 = vxpose.xlu0.b32.cont [12/16] 0.0, 128
    %886 = vxpose.xlu0.b32.cont [13/16] 0.0, 128
    %887 = vxpose.xlu0.b32.cont [14/16] 0.0, 128
    %888 = vxpose.xlu0.b32.cont [15/16] 0.0, 128
    %889 = vxpose.xlu0.b32.end [16/16] 0.0, 128
    %v890 = vpop.trf.xlu0
    %v891 = vpop.trf.xlu0
    %v892 = vpop.trf.xlu0
    %v893 = vpop.trf.xlu0
    %v894 = vpop.trf.xlu0
    %v895 = vpop.trf.xlu0
    %v896 = vpop.trf.xlu0
    %v897 = vpop.trf.xlu0
    %v898 = vpop.trf.xlu0
    %v899 = vpop.trf.xlu0
    %v900 = vpop.trf.xlu0
    %v901 = vpop.trf.xlu0
    %v902 = vpop.trf.xlu0
    %v903 = vpop.trf.xlu0
    %v904 = vpop.trf.xlu0
    %v905 = vpop.trf.xlu0
    %s906 = scalar_lea.vmem %s2, 64
    %v907 = vld [vmem:[%s906] sm:$0xff]
    %v908 = vld [vmem:[%s906 + $0x8] sm:$0xff]
    %v909 = vld [vmem:[%s906 + $0x10] sm:$0xff]
    %v910 = vld [vmem:[%s906 + $0x18] sm:$0xff]
    %vm911 = vcmp.ne.f32.partialorder %v907, 0.0
    %vm912 = vcmp.ne.f32.partialorder %v908, 0.0
    %vm913 = vcmp.ne.f32.partialorder %v909, 0.0
    %vm914 = vcmp.ne.f32.partialorder %v910, 0.0
    %915 = vset.pattern.permute.xlu0 4
    %916 = vperm.xlu0 %915, %v359
    %v917 = vpop.permute.xlu0 %916
    %919 = vset.pattern.permute.xlu0 4
    %920 = vperm.xlu0 %919, %v364
    %v921 = vpop.permute.xlu0 %920
    %923 = vset.pattern.permute.xlu0 4
    %924 = vperm.xlu0 %923, %v369
    %v925 = vpop.permute.xlu0 %924
    %927 = vset.pattern.permute.xlu0 4
    %928 = vperm.xlu0 %927, %v374
    %v929 = vpop.permute.xlu0 %928
    %v931 = vlaneseq
    %v932 = vshrl.u32 %v931, 7
    %v933 = vsub.s32 0, %v932
    %v934 = vrot.slane %v890, %v933
    %v935 = vadd.f32 %v917, %v934
    %v936 = vadd.f32 %v921, %v934
    %v937 = vadd.f32 %v925, %v934
    %v938 = vadd.f32 %v929, %v934
    %v939 = vsel %vm911, %v935, -1e+30
    %v940 = vsel %vm912, %v936, -1e+30
    %v941 = vsel %vm913, %v937, -1e+30
    %v942 = vsel %vm914, %v938, -1e+30
    %v943 = vsel %vm498, %v939, -inf
    %944 = vmax.xlane.f32.xlu0 %v943
    %v945 = vpop.xlane.xlu0 %944
    %v946 = vsel %vm498, %v940, -inf
    %947 = vmax.xlane.f32.xlu0 %v946
    %v948 = vpop.xlane.xlu0 %947
    %v949 = vsel %vm498, %v941, -inf
    %950 = vmax.xlane.f32.xlu0 %v949
    %v951 = vpop.xlane.xlu0 %950
    %v952 = vsel %vm498, %v942, -inf
    %953 = vmax.xlane.f32.xlu0 %v952
    %v954 = vpop.xlane.xlu0 %953
    %v955 = vsub.f32 %v939, %v945
    %v956 = vsub.f32 %v940, %v948
    %v957 = vsub.f32 %v941, %v951
    %v958 = vsub.f32 %v942, %v954
    %v959 = vmul.f32 %v955, 1.442695
    %v960 = vpow.pop %v959
    %v961 = vmul.f32 %v956, 1.442695
    %v962 = vpow.pop %v961
    %v963 = vmul.f32 %v957, 1.442695
    %v964 = vpow.pop %v963
    %v965 = vmul.f32 %v958, 1.442695
    %v966 = vpow.pop %v965
    %v967 = vsel %vm498, %v960, 0.0
    %968 = vadd.xlane.f32.xlu0 %v967
    %v969 = vpop.xlane.xlu0 %968
    %v970 = vsel %vm498, %v962, 0.0
    %971 = vadd.xlane.f32.xlu0 %v970
    %v972 = vpop.xlane.xlu0 %971
    %v973 = vsel %vm498, %v964, 0.0
    %974 = vadd.xlane.f32.xlu0 %v973
    %v975 = vpop.xlane.xlu0 %974
    %v976 = vsel %vm498, %v966, 0.0
    %977 = vadd.xlane.f32.xlu0 %v976
    %v978 = vpop.xlane.xlu0 %977
    %v979 = vrcp.pop %v969
    %v980 = vmul.f32 1.0, %v979
    %v981 = vrcp.pop %v972
    %v982 = vmul.f32 1.0, %v981
    %v983 = vrcp.pop %v975
    %v984 = vmul.f32 1.0, %v983
    %v985 = vrcp.pop %v978
    %v986 = vmul.f32 1.0, %v985
    %v987 = vmul.f32 %v907, %v980
    %v988 = vmul.f32 %v908, %v982
    %v989 = vmul.f32 %v909, %v984
    %v990 = vmul.f32 %v910, %v986
    %v991 = vmul.f32 %v960, %v987
    %v992 = vmul.f32 %v962, %v988
    %v993 = vmul.f32 %v964, %v989
    %v994 = vmul.f32 %v966, %v990
    %s995 = scalar_lea.vmem %s2, 96
    %v996 = vld [vmem:[%s995] sm:$0xff]
    %v997 = vld [vmem:[%s995 + $0x8] sm:$0xff]
    %v998 = vld [vmem:[%s995 + $0x10] sm:$0xff]
    %v999 = vld [vmem:[%s995 + $0x18] sm:$0xff]
    %vm1000 = vcmp.ne.f32.partialorder %v996, 0.0
    %vm1001 = vcmp.ne.f32.partialorder %v997, 0.0
    %vm1002 = vcmp.ne.f32.partialorder %v998, 0.0
    %vm1003 = vcmp.ne.f32.partialorder %v999, 0.0
    %1004 = vset.pattern.permute.xlu0 6
    %1005 = vperm.xlu0 %1004, %v359
    %v1006 = vpop.permute.xlu0 %1005
    %1008 = vset.pattern.permute.xlu0 6
    %1009 = vperm.xlu0 %1008, %v364
    %v1010 = vpop.permute.xlu0 %1009
    %1012 = vset.pattern.permute.xlu0 6
    %1013 = vperm.xlu0 %1012, %v369
    %v1014 = vpop.permute.xlu0 %1013
    %1016 = vset.pattern.permute.xlu0 6
    %1017 = vperm.xlu0 %1016, %v374
    %v1018 = vpop.permute.xlu0 %1017
    %v1020 = vlaneseq
    %v1021 = vshrl.u32 %v1020, 7
    %v1022 = vsub.s32 1, %v1021
    %v1023 = vrot.slane %v890, %v1022
    %v1024 = vadd.f32 %v1006, %v1023
    %v1025 = vadd.f32 %v1010, %v1023
    %v1026 = vadd.f32 %v1014, %v1023
    %v1027 = vadd.f32 %v1018, %v1023
    %v1028 = vsel %vm1000, %v1024, -1e+30
    %v1029 = vsel %vm1001, %v1025, -1e+30
    %v1030 = vsel %vm1002, %v1026, -1e+30
    %v1031 = vsel %vm1003, %v1027, -1e+30
    %v1032 = vsel %vm498, %v1028, -inf
    %1033 = vmax.xlane.f32.xlu0 %v1032
    %v1034 = vpop.xlane.xlu0 %1033
    %v1035 = vsel %vm498, %v1029, -inf
    %1036 = vmax.xlane.f32.xlu0 %v1035
    %v1037 = vpop.xlane.xlu0 %1036
    %v1038 = vsel %vm498, %v1030, -inf
    %1039 = vmax.xlane.f32.xlu0 %v1038
    %v1040 = vpop.xlane.xlu0 %1039
    %v1041 = vsel %vm498, %v1031, -inf
    %1042 = vmax.xlane.f32.xlu0 %v1041
    %v1043 = vpop.xlane.xlu0 %1042
    %v1044 = vsub.f32 %v1028, %v1034
    %v1045 = vsub.f32 %v1029, %v1037
    %v1046 = vsub.f32 %v1030, %v1040
    %v1047 = vsub.f32 %v1031, %v1043
    %v1048 = vmul.f32 %v1044, 1.442695
    %v1049 = vpow.pop %v1048
    %v1050 = vmul.f32 %v1045, 1.442695
    %v1051 = vpow.pop %v1050
    %v1052 = vmul.f32 %v1046, 1.442695
    %v1053 = vpow.pop %v1052
    %v1054 = vmul.f32 %v1047, 1.442695
    %v1055 = vpow.pop %v1054
    %v1056 = vsel %vm498, %v1049, 0.0
    %1057 = vadd.xlane.f32.xlu0 %v1056
    %v1058 = vpop.xlane.xlu0 %1057
    %v1059 = vsel %vm498, %v1051, 0.0
    %1060 = vadd.xlane.f32.xlu0 %v1059
    %v1061 = vpop.xlane.xlu0 %1060
    %v1062 = vsel %vm498, %v1053, 0.0
    %1063 = vadd.xlane.f32.xlu0 %v1062
    %v1064 = vpop.xlane.xlu0 %1063
    %v1065 = vsel %vm498, %v1055, 0.0
    %1066 = vadd.xlane.f32.xlu0 %v1065
    %v1067 = vpop.xlane.xlu0 %1066
    %v1068 = vrcp.pop %v1058
    %v1069 = vmul.f32 1.0, %v1068
    %v1070 = vrcp.pop %v1061
    %v1071 = vmul.f32 1.0, %v1070
    %v1072 = vrcp.pop %v1064
    %v1073 = vmul.f32 1.0, %v1072
    %v1074 = vrcp.pop %v1067
    %v1075 = vmul.f32 1.0, %v1074
    %v1076 = vmul.f32 %v996, %v1069
    %v1077 = vmul.f32 %v997, %v1071
    %v1078 = vmul.f32 %v998, %v1073
    %v1079 = vmul.f32 %v999, %v1075
    %v1080 = vmul.f32 %v1049, %v1076
    %v1081 = vmul.f32 %v1051, %v1077
    %v1082 = vmul.f32 %v1053, %v1078
    %v1083 = vmul.f32 %v1055, %v1079
    %v1085 = vsel %vm498, %v1080, 0
    %v1088 = vsel %vm498, %v1081, 0
    %v1091 = vsel %vm498, %v1082, 0
    %v1094 = vsel %vm498, %v1083, 0
    %1096 = vmatprep.subr.mxu0 0.0
    %1097 = vmatpush1.msra.mxu0 %v172
    %1098 = vmatprep.subr.mxu0 0.0
    %1099 = vmatpush1.msra.mxu0 %v178
    %1100 = vmatprep.subr.mxu0 0.0
    %1101 = vmatpush1.msra.mxu0 %v184
    %1102 = vmatprep.subr.mxu0 0.0
    %1103 = vmatpush1.msra.mxu0 %v190
    %1104 = vmatprep.subr.mxu0 0.0
    %1105 = vmatpush1.msra.mxu0 0.0
    %1106 = vmatprep.subr.mxu0 0.0
    %1107 = vmatpush1.msra.mxu0 0.0
    %1108 = vmatprep.subr.mxu0 0.0
    %1109 = vmatpush1.msra.mxu0 0.0
    %1110 = vmatprep.subr.mxu0 0.0
    %1111 = vmatpush1.msra.mxu0 0.0
    %1112 = vmatprep.subr.mxu0 0.0
    %1113 = vmatpush1.msra.mxu0 0.0
    %1114 = vmatprep.subr.mxu0 0.0
    %1115 = vmatpush1.msra.mxu0 0.0
    %1116 = vmatprep.subr.mxu0 0.0
    %1117 = vmatpush1.msra.mxu0 0.0
    %1118 = vmatprep.subr.mxu0 0.0
    %1119 = vmatpush1.msra.mxu0 0.0
    %1120 = vmatprep.subr.mxu0 0.0
    %1121 = vmatpush1.msra.mxu0 0.0
    %1122 = vmatprep.subr.mxu0 0.0
    %1123 = vmatpush1.msra.mxu0 0.0
    %1124 = vmatprep.subr.mxu0 0.0
    %1125 = vmatpush1.msra.mxu0 0.0
    %1126 = vmatprep.subr.mxu0 0.0
    %1127 = vmatpush1.msra.mxu0 0.0
    %1128 = vmatprep.subr.mxu0 0.0
    %1129 = vmatpush1.msra.mxu0 0.0
    %1130 = vmatprep.subr.mxu0 0.0
    %1131 = vmatpush1.msra.mxu0 0.0
    %1132 = vmatprep.subr.mxu0 0.0
    %1133 = vmatpush1.msra.mxu0 0.0
    %1134 = vmatprep.subr.mxu0 0.0
    %1135 = vmatpush1.msra.mxu0 0.0
    %1136 = vmatprep.subr.mxu0 0.0
    %1137 = vmatpush1.msra.mxu0 0.0
    %1138 = vmatprep.subr.mxu0 0.0
    %1139 = vmatpush1.msra.mxu0 0.0
    %1140 = vmatprep.subr.mxu0 0.0
    %1141 = vmatpush1.msra.mxu0 0.0
    %1142 = vmatprep.subr.mxu0 0.0
    %1143 = vmatpush1.msra.mxu0 0.0
    %1144 = vmatprep.subr.mxu0 0.0
    %1145 = vmatpush1.msra.mxu0 0.0
    %1146 = vmatprep.subr.mxu0 0.0
    %1147 = vmatpush1.msra.mxu0 0.0
    %1148 = vmatprep.subr.mxu0 0.0
    %1149 = vmatpush1.msra.mxu0 0.0
    %1150 = vmatprep.subr.mxu0 0.0
    %1151 = vmatpush1.msra.mxu0 0.0
    %1152 = vmatprep.subr.mxu0 0.0
    %1153 = vmatpush1.msra.mxu0 0.0
    %1154 = vmatprep.subr.mxu0 0.0
    %1155 = vmatpush1.msra.mxu0 0.0
    %1156 = vmatprep.subr.mxu0 0.0
    %1157 = vmatpush1.msra.mxu0 0.0
    %1158 = vmatprep.subr.mxu0 0.0
    %1159 = vmatpush1.msra.mxu0 0.0
    %1160 = vmatprep.mubr.f32.mxu0 0.0
    %1161 = vmatmul.mubr.f32.gmra.mrb[0].mxu0 %v1085
    %v1162 = vpop.f32.mrb[0].mxu0
    %v1163 = vadd.f32 0.0, %v1162
    %v1164 = vpop.f32.mrb[0].mxu0
    %1165 = vmatprep.mubr.f32.mxu0 0.0
    %1166 = vmatmul.mubr.f32.gmra.mrb[0].mxu0 %v1088
    %v1167 = vpop.f32.mrb[0].mxu0
    %v1168 = vadd.f32 0.0, %v1167
    %v1169 = vpop.f32.mrb[0].mxu0
    %1170 = vmatprep.mubr.f32.mxu0 0.0
    %1171 = vmatmul.mubr.f32.gmra.mrb[0].mxu0 %v1091
    %v1172 = vpop.f32.mrb[0].mxu0
    %v1173 = vadd.f32 0.0, %v1172
    %v1174 = vpop.f32.mrb[0].mxu0
    %1175 = vmatprep.mubr.f32.mxu0 0.0
    %1176 = vmatmul.mubr.f32.gmra.mrb[0].mxu0 %v1094
    %v1177 = vpop.f32.mrb[0].mxu0
    %v1178 = vadd.f32 0.0, %v1177
    %v1179 = vpop.f32.mrb[0].mxu0
    %1180 = vdwg.mxu0
    %v1182 = vsel %vm498, %v991, 0
    %v1185 = vsel %vm498, %v992, 0
    %v1188 = vsel %vm498, %v993, 0
    %v1191 = vsel %vm498, %v994, 0
    %1193 = vmatprep.subr.mxu0 0.0
    %1194 = vmatpush1.msra.mxu0 %v170
    %1195 = vmatprep.subr.mxu0 0.0
    %1196 = vmatpush1.msra.mxu0 %v176
    %1197 = vmatprep.subr.mxu0 0.0
    %1198 = vmatpush1.msra.mxu0 %v182
    %1199 = vmatprep.subr.mxu0 0.0
    %1200 = vmatpush1.msra.mxu0 %v188
    %1201 = vmatprep.subr.mxu0 0.0
    %1202 = vmatpush1.msra.mxu0 0.0
    %1203 = vmatprep.subr.mxu0 0.0
    %1204 = vmatpush1.msra.mxu0 0.0
    %1205 = vmatprep.subr.mxu0 0.0
    %1206 = vmatpush1.msra.mxu0 0.0
    %1207 = vmatprep.subr.mxu0 0.0
    %1208 = vmatpush1.msra.mxu0 0.0
    %1209 = vmatprep.subr.mxu0 0.0
    %1210 = vmatpush1.msra.mxu0 0.0
    %1211 = vmatprep.subr.mxu0 0.0
    %1212 = vmatpush1.msra.mxu0 0.0
    %1213 = vmatprep.subr.mxu0 0.0
    %1214 = vmatpush1.msra.mxu0 0.0
    %1215 = vmatprep.subr.mxu0 0.0
    %1216 = vmatpush1.msra.mxu0 0.0
    %1217 = vmatprep.subr.mxu0 0.0
    %1218 = vmatpush1.msra.mxu0 0.0
    %1219 = vmatprep.subr.mxu0 0.0
    %1220 = vmatpush1.msra.mxu0 0.0
    %1221 = vmatprep.subr.mxu0 0.0
    %1222 = vmatpush1.msra.mxu0 0.0
    %1223 = vmatprep.subr.mxu0 0.0
    %1224 = vmatpush1.msra.mxu0 0.0
    %1225 = vmatprep.subr.mxu0 0.0
    %1226 = vmatpush1.msra.mxu0 0.0
    %1227 = vmatprep.subr.mxu0 0.0
    %1228 = vmatpush1.msra.mxu0 0.0
    %1229 = vmatprep.subr.mxu0 0.0
    %1230 = vmatpush1.msra.mxu0 0.0
    %1231 = vmatprep.subr.mxu0 0.0
    %1232 = vmatpush1.msra.mxu0 0.0
    %1233 = vmatprep.subr.mxu0 0.0
    %1234 = vmatpush1.msra.mxu0 0.0
    %1235 = vmatprep.subr.mxu0 0.0
    %1236 = vmatpush1.msra.mxu0 0.0
    %1237 = vmatprep.subr.mxu0 0.0
    %1238 = vmatpush1.msra.mxu0 0.0
    %1239 = vmatprep.subr.mxu0 0.0
    %1240 = vmatpush1.msra.mxu0 0.0
    %1241 = vmatprep.subr.mxu0 0.0
    %1242 = vmatpush1.msra.mxu0 0.0
    %1243 = vmatprep.subr.mxu0 0.0
    %1244 = vmatpush1.msra.mxu0 0.0
    %1245 = vmatprep.subr.mxu0 0.0
    %1246 = vmatpush1.msra.mxu0 0.0
    %1247 = vmatprep.subr.mxu0 0.0
    %1248 = vmatpush1.msra.mxu0 0.0
    %1249 = vmatprep.subr.mxu0 0.0
    %1250 = vmatpush1.msra.mxu0 0.0
    %1251 = vmatprep.subr.mxu0 0.0
    %1252 = vmatpush1.msra.mxu0 0.0
    %1253 = vmatprep.subr.mxu0 0.0
    %1254 = vmatpush1.msra.mxu0 0.0
    %1255 = vmatprep.subr.mxu0 0.0
    %1256 = vmatpush1.msra.mxu0 0.0
    %1257 = vmatprep.mubr.f32.mxu0 0.0
    %1258 = vmatmul.mubr.f32.gmra.mrb[0].mxu0 %v1182
    %v1259 = vpop.f32.mrb[0].mxu0
    %v1260 = vadd.f32 %v1163, %v1259
    %v1261 = vpop.f32.mrb[0].mxu0
    %1262 = vmatprep.mubr.f32.mxu0 0.0
    %1263 = vmatmul.mubr.f32.gmra.mrb[0].mxu0 %v1185
    %v1264 = vpop.f32.mrb[0].mxu0
    %v1265 = vadd.f32 %v1168, %v1264
    %v1266 = vpop.f32.mrb[0].mxu0
    %1267 = vmatprep.mubr.f32.mxu0 0.0
    %1268 = vmatmul.mubr.f32.gmra.mrb[0].mxu0 %v1188
    %v1269 = vpop.f32.mrb[0].mxu0
    %v1270 = vadd.f32 %v1173, %v1269
    %v1271 = vpop.f32.mrb[0].mxu0
    %1272 = vmatprep.mubr.f32.mxu0 0.0
    %1273 = vmatmul.mubr.f32.gmra.mrb[0].mxu0 %v1191
    %v1274 = vpop.f32.mrb[0].mxu0
    %v1275 = vadd.f32 %v1178, %v1274
    %v1276 = vpop.f32.mrb[0].mxu0
    %1277 = vdwg.mxu0
    %v1278 = vmax.f32 %v1260, 0.0
    %v1279 = vmax.f32 %v1265, 0.0
    %v1280 = vmax.f32 %v1270, 0.0
    %v1281 = vmax.f32 %v1275, 0.0
    %1282 = vst [vmem:[#allocation2 + $0x20] sm:$0xff] %v1278
    %1283 = vst [vmem:[#allocation2 + $0x28] sm:$0xff] %v1279
    %1284 = vst [vmem:[#allocation2 + $0x30] sm:$0xff] %v1280
    %1285 = vst [vmem:[#allocation2 + $0x38] sm:$0xff] %v1281
    %1290 = vrot.lane.b32.xlu0 %v379, 119
    %v1291 = vpop.permute.xlu0 %1290
    %1292 = vrot.lane.b32.xlu0 %v384, 119
    %v1293 = vpop.permute.xlu0 %1292
    %1294 = vrot.lane.b32.xlu0 %v389, 119
    %v1295 = vpop.permute.xlu0 %1294
    %1296 = vrot.lane.b32.xlu0 %v394, 119
    %v1297 = vpop.permute.xlu0 %1296
    %1302 = vrot.lane.b32.xlu0 %v379, 118
    %v1303 = vpop.permute.xlu0 %1302
    %1304 = vrot.lane.b32.xlu0 %v384, 118
    %v1305 = vpop.permute.xlu0 %1304
    %1306 = vrot.lane.b32.xlu0 %v389, 118
    %v1307 = vpop.permute.xlu0 %1306
    %1308 = vrot.lane.b32.xlu0 %v394, 118
    %v1309 = vpop.permute.xlu0 %1308
    %v1314 = vsel %vm425, %v1291, %v1303
    %v1315 = vsel %vm425, %v1293, %v1305
    %v1316 = vsel %vm425, %v1295, %v1307
    %v1317 = vsel %vm425, %v1297, %v1309
    %1318 = vxpose.xlu0.b32.start [1/16] %v1314, 128
    %1319 = vxpose.xlu0.b32.cont [2/16] %v1315, 128
    %1320 = vxpose.xlu0.b32.cont [3/16] %v1316, 128
    %1321 = vxpose.xlu0.b32.cont [4/16] %v1317, 128
    %1322 = vxpose.xlu0.b32.cont [5/16] 0.0, 128
    %1323 = vxpose.xlu0.b32.cont [6/16] 0.0, 128
    %1324 = vxpose.xlu0.b32.cont [7/16] 0.0, 128
    %1325 = vxpose.xlu0.b32.cont [8/16] 0.0, 128
    %1326 = vxpose.xlu0.b32.cont [9/16] 0.0, 128
    %1327 = vxpose.xlu0.b32.cont [10/16] 0.0, 128
    %1328 = vxpose.xlu0.b32.cont [11/16] 0.0, 128
    %1329 = vxpose.xlu0.b32.cont [12/16] 0.0, 128
    %1330 = vxpose.xlu0.b32.cont [13/16] 0.0, 128
    %1331 = vxpose.xlu0.b32.cont [14/16] 0.0, 128
    %1332 = vxpose.xlu0.b32.cont [15/16] 0.0, 128
    %1333 = vxpose.xlu0.b32.end [16/16] 0.0, 128
    %v1334 = vpop.trf.xlu0
    %v1335 = vpop.trf.xlu0
    %v1336 = vpop.trf.xlu0
    %v1337 = vpop.trf.xlu0
    %v1338 = vpop.trf.xlu0
    %v1339 = vpop.trf.xlu0
    %v1340 = vpop.trf.xlu0
    %v1341 = vpop.trf.xlu0
    %v1342 = vpop.trf.xlu0
    %v1343 = vpop.trf.xlu0
    %v1344 = vpop.trf.xlu0
    %v1345 = vpop.trf.xlu0
    %v1346 = vpop.trf.xlu0
    %v1347 = vpop.trf.xlu0
    %v1348 = vpop.trf.xlu0
    %v1349 = vpop.trf.xlu0
    %s1350 = scalar_lea.vmem %s2, 128
    %v1351 = vld [vmem:[%s1350] sm:$0xff]
    %v1352 = vld [vmem:[%s1350 + $0x8] sm:$0xff]
    %v1353 = vld [vmem:[%s1350 + $0x10] sm:$0xff]
    %v1354 = vld [vmem:[%s1350 + $0x18] sm:$0xff]
    %vm1355 = vcmp.ne.f32.partialorder %v1351, 0.0
    %vm1356 = vcmp.ne.f32.partialorder %v1352, 0.0
    %vm1357 = vcmp.ne.f32.partialorder %v1353, 0.0
    %vm1358 = vcmp.ne.f32.partialorder %v1354, 0.0
    %1359 = vset.pattern.permute.xlu0 8
    %1360 = vperm.xlu0 %1359, %v379
    %v1361 = vpop.permute.xlu0 %1360
    %1363 = vset.pattern.permute.xlu0 8
    %1364 = vperm.xlu0 %1363, %v384
    %v1365 = vpop.permute.xlu0 %1364
    %1367 = vset.pattern.permute.xlu0 8
    %1368 = vperm.xlu0 %1367, %v389
    %v1369 = vpop.permute.xlu0 %1368
    %1371 = vset.pattern.permute.xlu0 8
    %1372 = vperm.xlu0 %1371, %v394
    %v1373 = vpop.permute.xlu0 %1372
    %v1375 = vlaneseq
    %v1376 = vshrl.u32 %v1375, 7
    %v1377 = vsub.s32 0, %v1376
    %v1378 = vrot.slane %v1334, %v1377
    %v1379 = vadd.f32 %v1361, %v1378
    %v1380 = vadd.f32 %v1365, %v1378
    %v1381 = vadd.f32 %v1369, %v1378
    %v1382 = vadd.f32 %v1373, %v1378
    %v1383 = vsel %vm1355, %v1379, -1e+30
    %v1384 = vsel %vm1356, %v1380, -1e+30
    %v1385 = vsel %vm1357, %v1381, -1e+30
    %v1386 = vsel %vm1358, %v1382, -1e+30
    %v1387 = vsel %vm498, %v1383, -inf
    %1388 = vmax.xlane.f32.xlu0 %v1387
    %v1389 = vpop.xlane.xlu0 %1388
    %v1390 = vsel %vm498, %v1384, -inf
    %1391 = vmax.xlane.f32.xlu0 %v1390
    %v1392 = vpop.xlane.xlu0 %1391
    %v1393 = vsel %vm498, %v1385, -inf
    %1394 = vmax.xlane.f32.xlu0 %v1393
    %v1395 = vpop.xlane.xlu0 %1394
    %v1396 = vsel %vm498, %v1386, -inf
    %1397 = vmax.xlane.f32.xlu0 %v1396
    %v1398 = vpop.xlane.xlu0 %1397
    %v1399 = vsub.f32 %v1383, %v1389
    %v1400 = vsub.f32 %v1384, %v1392
    %v1401 = vsub.f32 %v1385, %v1395
    %v1402 = vsub.f32 %v1386, %v1398
    %v1403 = vmul.f32 %v1399, 1.442695
    %v1404 = vpow.pop %v1403
    %v1405 = vmul.f32 %v1400, 1.442695
    %v1406 = vpow.pop %v1405
    %v1407 = vmul.f32 %v1401, 1.442695
    %v1408 = vpow.pop %v1407
    %v1409 = vmul.f32 %v1402, 1.442695
    %v1410 = vpow.pop %v1409
    %v1411 = vsel %vm498, %v1404, 0.0
    %1412 = vadd.xlane.f32.xlu0 %v1411
    %v1413 = vpop.xlane.xlu0 %1412
    %v1414 = vsel %vm498, %v1406, 0.0
    %1415 = vadd.xlane.f32.xlu0 %v1414
    %v1416 = vpop.xlane.xlu0 %1415
    %v1417 = vsel %vm498, %v1408, 0.0
    %1418 = vadd.xlane.f32.xlu0 %v1417
    %v1419 = vpop.xlane.xlu0 %1418
    %v1420 = vsel %vm498, %v1410, 0.0
    %1421 = vadd.xlane.f32.xlu0 %v1420
    %v1422 = vpop.xlane.xlu0 %1421
    %v1423 = vrcp.pop %v1413
    %v1424 = vmul.f32 1.0, %v1423
    %v1425 = vrcp.pop %v1416
    %v1426 = vmul.f32 1.0, %v1425
    %v1427 = vrcp.pop %v1419
    %v1428 = vmul.f32 1.0, %v1427
    %v1429 = vrcp.pop %v1422
    %v1430 = vmul.f32 1.0, %v1429
    %v1431 = vmul.f32 %v1351, %v1424
    %v1432 = vmul.f32 %v1352, %v1426
    %v1433 = vmul.f32 %v1353, %v1428
    %v1434 = vmul.f32 %v1354, %v1430
    %v1435 = vmul.f32 %v1404, %v1431
    %v1436 = vmul.f32 %v1406, %v1432
    %v1437 = vmul.f32 %v1408, %v1433
    %v1438 = vmul.f32 %v1410, %v1434
    %s1439 = scalar_lea.vmem %s2, 160
    %v1440 = vld [vmem:[%s1439] sm:$0xff]
    %v1441 = vld [vmem:[%s1439 + $0x8] sm:$0xff]
    %v1442 = vld [vmem:[%s1439 + $0x10] sm:$0xff]
    %v1443 = vld [vmem:[%s1439 + $0x18] sm:$0xff]
    %vm1444 = vcmp.ne.f32.partialorder %v1440, 0.0
    %vm1445 = vcmp.ne.f32.partialorder %v1441, 0.0
    %vm1446 = vcmp.ne.f32.partialorder %v1442, 0.0
    %vm1447 = vcmp.ne.f32.partialorder %v1443, 0.0
    %1448 = vset.pattern.permute.xlu0 10
    %1449 = vperm.xlu0 %1448, %v379
    %v1450 = vpop.permute.xlu0 %1449
    %1452 = vset.pattern.permute.xlu0 10
    %1453 = vperm.xlu0 %1452, %v384
    %v1454 = vpop.permute.xlu0 %1453
    %1456 = vset.pattern.permute.xlu0 10
    %1457 = vperm.xlu0 %1456, %v389
    %v1458 = vpop.permute.xlu0 %1457
    %1460 = vset.pattern.permute.xlu0 10
    %1461 = vperm.xlu0 %1460, %v394
    %v1462 = vpop.permute.xlu0 %1461
    %v1464 = vlaneseq
    %v1465 = vshrl.u32 %v1464, 7
    %v1466 = vsub.s32 1, %v1465
    %v1467 = vrot.slane %v1334, %v1466
    %v1468 = vadd.f32 %v1450, %v1467
    %v1469 = vadd.f32 %v1454, %v1467
    %v1470 = vadd.f32 %v1458, %v1467
    %v1471 = vadd.f32 %v1462, %v1467
    %v1472 = vsel %vm1444, %v1468, -1e+30
    %v1473 = vsel %vm1445, %v1469, -1e+30
    %v1474 = vsel %vm1446, %v1470, -1e+30
    %v1475 = vsel %vm1447, %v1471, -1e+30
    %v1476 = vsel %vm498, %v1472, -inf
    %1477 = vmax.xlane.f32.xlu0 %v1476
    %v1478 = vpop.xlane.xlu0 %1477
    %v1479 = vsel %vm498, %v1473, -inf
    %1480 = vmax.xlane.f32.xlu0 %v1479
    %v1481 = vpop.xlane.xlu0 %1480
    %v1482 = vsel %vm498, %v1474, -inf
    %1483 = vmax.xlane.f32.xlu0 %v1482
    %v1484 = vpop.xlane.xlu0 %1483
    %v1485 = vsel %vm498, %v1475, -inf
    %1486 = vmax.xlane.f32.xlu0 %v1485
    %v1487 = vpop.xlane.xlu0 %1486
    %v1488 = vsub.f32 %v1472, %v1478
    %v1489 = vsub.f32 %v1473, %v1481
    %v1490 = vsub.f32 %v1474, %v1484
    %v1491 = vsub.f32 %v1475, %v1487
    %v1492 = vmul.f32 %v1488, 1.442695
    %v1493 = vpow.pop %v1492
    %v1494 = vmul.f32 %v1489, 1.442695
    %v1495 = vpow.pop %v1494
    %v1496 = vmul.f32 %v1490, 1.442695
    %v1497 = vpow.pop %v1496
    %v1498 = vmul.f32 %v1491, 1.442695
    %v1499 = vpow.pop %v1498
    %v1500 = vsel %vm498, %v1493, 0.0
    %1501 = vadd.xlane.f32.xlu0 %v1500
    %v1502 = vpop.xlane.xlu0 %1501
    %v1503 = vsel %vm498, %v1495, 0.0
    %1504 = vadd.xlane.f32.xlu0 %v1503
    %v1505 = vpop.xlane.xlu0 %1504
    %v1506 = vsel %vm498, %v1497, 0.0
    %1507 = vadd.xlane.f32.xlu0 %v1506
    %v1508 = vpop.xlane.xlu0 %1507
    %v1509 = vsel %vm498, %v1499, 0.0
    %1510 = vadd.xlane.f32.xlu0 %v1509
    %v1511 = vpop.xlane.xlu0 %1510
    %v1512 = vrcp.pop %v1502
    %v1513 = vmul.f32 1.0, %v1512
    %v1514 = vrcp.pop %v1505
    %v1515 = vmul.f32 1.0, %v1514
    %v1516 = vrcp.pop %v1508
    %v1517 = vmul.f32 1.0, %v1516
    %v1518 = vrcp.pop %v1511
    %v1519 = vmul.f32 1.0, %v1518
    %v1520 = vmul.f32 %v1440, %v1513
    %v1521 = vmul.f32 %v1441, %v1515
    %v1522 = vmul.f32 %v1442, %v1517
    %v1523 = vmul.f32 %v1443, %v1519
    %v1524 = vmul.f32 %v1493, %v1520
    %v1525 = vmul.f32 %v1495, %v1521
    %v1526 = vmul.f32 %v1497, %v1522
    %v1527 = vmul.f32 %v1499, %v1523
    %v1529 = vsel %vm498, %v1524, 0
    %v1532 = vsel %vm498, %v1525, 0
    %v1535 = vsel %vm498, %v1526, 0
    %v1538 = vsel %vm498, %v1527, 0
    %1540 = vmatprep.subr.mxu0 0.0
    %1541 = vmatpush1.msra.mxu0 %v196
    %1542 = vmatprep.subr.mxu0 0.0
    %1543 = vmatpush1.msra.mxu0 %v202
    %1544 = vmatprep.subr.mxu0 0.0
    %1545 = vmatpush1.msra.mxu0 %v208
    %1546 = vmatprep.subr.mxu0 0.0
    %1547 = vmatpush1.msra.mxu0 %v214
    %1548 = vmatprep.subr.mxu0 0.0
    %1549 = vmatpush1.msra.mxu0 0.0
    %1550 = vmatprep.subr.mxu0 0.0
    %1551 = vmatpush1.msra.mxu0 0.0
    %1552 = vmatprep.subr.mxu0 0.0
    %1553 = vmatpush1.msra.mxu0 0.0
    %1554 = vmatprep.subr.mxu0 0.0
    %1555 = vmatpush1.msra.mxu0 0.0
    %1556 = vmatprep.subr.mxu0 0.0
    %1557 = vmatpush1.msra.mxu0 0.0
    %1558 = vmatprep.subr.mxu0 0.0
    %1559 = vmatpush1.msra.mxu0 0.0
    %1560 = vmatprep.subr.mxu0 0.0
    %1561 = vmatpush1.msra.mxu0 0.0
    %1562 = vmatprep.subr.mxu0 0.0
    %1563 = vmatpush1.msra.mxu0 0.0
    %1564 = vmatprep.subr.mxu0 0.0
    %1565 = vmatpush1.msra.mxu0 0.0
    %1566 = vmatprep.subr.mxu0 0.0
    %1567 = vmatpush1.msra.mxu0 0.0
    %1568 = vmatprep.subr.mxu0 0.0
    %1569 = vmatpush1.msra.mxu0 0.0
    %1570 = vmatprep.subr.mxu0 0.0
    %1571 = vmatpush1.msra.mxu0 0.0
    %1572 = vmatprep.subr.mxu0 0.0
    %1573 = vmatpush1.msra.mxu0 0.0
    %1574 = vmatprep.subr.mxu0 0.0
    %1575 = vmatpush1.msra.mxu0 0.0
    %1576 = vmatprep.subr.mxu0 0.0
    %1577 = vmatpush1.msra.mxu0 0.0
    %1578 = vmatprep.subr.mxu0 0.0
    %1579 = vmatpush1.msra.mxu0 0.0
    %1580 = vmatprep.subr.mxu0 0.0
    %1581 = vmatpush1.msra.mxu0 0.0
    %1582 = vmatprep.subr.mxu0 0.0
    %1583 = vmatpush1.msra.mxu0 0.0
    %1584 = vmatprep.subr.mxu0 0.0
    %1585 = vmatpush1.msra.mxu0 0.0
    %1586 = vmatprep.subr.mxu0 0.0
    %1587 = vmatpush1.msra.mxu0 0.0
    %1588 = vmatprep.subr.mxu0 0.0
    %1589 = vmatpush1.msra.mxu0 0.0
    %1590 = vmatprep.subr.mxu0 0.0
    %1591 = vmatpush1.msra.mxu0 0.0
    %1592 = vmatprep.subr.mxu0 0.0
    %1593 = vmatpush1.msra.mxu0 0.0
    %1594 = vmatprep.subr.mxu0 0.0
    %1595 = vmatpush1.msra.mxu0 0.0
    %1596 = vmatprep.subr.mxu0 0.0
    %1597 = vmatpush1.msra.mxu0 0.0
    %1598 = vmatprep.subr.mxu0 0.0
    %1599 = vmatpush1.msra.mxu0 0.0
    %1600 = vmatprep.subr.mxu0 0.0
    %1601 = vmatpush1.msra.mxu0 0.0
    %1602 = vmatprep.subr.mxu0 0.0
    %1603 = vmatpush1.msra.mxu0 0.0
    %1604 = vmatprep.mubr.f32.mxu0 0.0
    %1605 = vmatmul.mubr.f32.gmra.mrb[0].mxu0 %v1529
    %v1606 = vpop.f32.mrb[0].mxu0
    %v1607 = vadd.f32 0.0, %v1606
    %v1608 = vpop.f32.mrb[0].mxu0
    %1609 = vmatprep.mubr.f32.mxu0 0.0
    %1610 = vmatmul.mubr.f32.gmra.mrb[0].mxu0 %v1532
    %v1611 = vpop.f32.mrb[0].mxu0
    %v1612 = vadd.f32 0.0, %v1611
    %v1613 = vpop.f32.mrb[0].mxu0
    %1614 = vmatprep.mubr.f32.mxu0 0.0
    %1615 = vmatmul.mubr.f32.gmra.mrb[0].mxu0 %v1535
    %v1616 = vpop.f32.mrb[0].mxu0
    %v1617 = vadd.f32 0.0, %v1616
    %v1618 = vpop.f32.mrb[0].mxu0
    %1619 = vmatprep.mubr.f32.mxu0 0.0
    %1620 = vmatmul.mubr.f32.gmra.mrb[0].mxu0 %v1538
    %v1621 = vpop.f32.mrb[0].mxu0
    %v1622 = vadd.f32 0.0, %v1621
    %v1623 = vpop.f32.mrb[0].mxu0
    %1624 = vdwg.mxu0
    %v1626 = vsel %vm498, %v1435, 0
    %v1629 = vsel %vm498, %v1436, 0
    %v1632 = vsel %vm498, %v1437, 0
    %v1635 = vsel %vm498, %v1438, 0
    %1637 = vmatprep.subr.mxu0 0.0
    %1638 = vmatpush1.msra.mxu0 %v194
    %1639 = vmatprep.subr.mxu0 0.0
    %1640 = vmatpush1.msra.mxu0 %v200
    %1641 = vmatprep.subr.mxu0 0.0
    %1642 = vmatpush1.msra.mxu0 %v206
    %1643 = vmatprep.subr.mxu0 0.0
    %1644 = vmatpush1.msra.mxu0 %v212
    %1645 = vmatprep.subr.mxu0 0.0
    %1646 = vmatpush1.msra.mxu0 0.0
    %1647 = vmatprep.subr.mxu0 0.0
    %1648 = vmatpush1.msra.mxu0 0.0
    %1649 = vmatprep.subr.mxu0 0.0
    %1650 = vmatpush1.msra.mxu0 0.0
    %1651 = vmatprep.subr.mxu0 0.0
    %1652 = vmatpush1.msra.mxu0 0.0
    %1653 = vmatprep.subr.mxu0 0.0
    %1654 = vmatpush1.msra.mxu0 0.0
    %1655 = vmatprep.subr.mxu0 0.0
    %1656 = vmatpush1.msra.mxu0 0.0
    %1657 = vmatprep.subr.mxu0 0.0
    %1658 = vmatpush1.msra.mxu0 0.0
    %1659 = vmatprep.subr.mxu0 0.0
    %1660 = vmatpush1.msra.mxu0 0.0
    %1661 = vmatprep.subr.mxu0 0.0
    %1662 = vmatpush1.msra.mxu0 0.0
    %1663 = vmatprep.subr.mxu0 0.0
    %1664 = vmatpush1.msra.mxu0 0.0
    %1665 = vmatprep.subr.mxu0 0.0
    %1666 = vmatpush1.msra.mxu0 0.0
    %1667 = vmatprep.subr.mxu0 0.0
    %1668 = vmatpush1.msra.mxu0 0.0
    %1669 = vmatprep.subr.mxu0 0.0
    %1670 = vmatpush1.msra.mxu0 0.0
    %1671 = vmatprep.subr.mxu0 0.0
    %1672 = vmatpush1.msra.mxu0 0.0
    %1673 = vmatprep.subr.mxu0 0.0
    %1674 = vmatpush1.msra.mxu0 0.0
    %1675 = vmatprep.subr.mxu0 0.0
    %1676 = vmatpush1.msra.mxu0 0.0
    %1677 = vmatprep.subr.mxu0 0.0
    %1678 = vmatpush1.msra.mxu0 0.0
    %1679 = vmatprep.subr.mxu0 0.0
    %1680 = vmatpush1.msra.mxu0 0.0
    %1681 = vmatprep.subr.mxu0 0.0
    %1682 = vmatpush1.msra.mxu0 0.0
    %1683 = vmatprep.subr.mxu0 0.0
    %1684 = vmatpush1.msra.mxu0 0.0
    %1685 = vmatprep.subr.mxu0 0.0
    %1686 = vmatpush1.msra.mxu0 0.0
    %1687 = vmatprep.subr.mxu0 0.0
    %1688 = vmatpush1.msra.mxu0 0.0
    %1689 = vmatprep.subr.mxu0 0.0
    %1690 = vmatpush1.msra.mxu0 0.0
    %1691 = vmatprep.subr.mxu0 0.0
    %1692 = vmatpush1.msra.mxu0 0.0
    %1693 = vmatprep.subr.mxu0 0.0
    %1694 = vmatpush1.msra.mxu0 0.0
    %1695 = vmatprep.subr.mxu0 0.0
    %1696 = vmatpush1.msra.mxu0 0.0
    %1697 = vmatprep.subr.mxu0 0.0
    %1698 = vmatpush1.msra.mxu0 0.0
    %1699 = vmatprep.subr.mxu0 0.0
    %1700 = vmatpush1.msra.mxu0 0.0
    %1701 = vmatprep.mubr.f32.mxu0 0.0
    %1702 = vmatmul.mubr.f32.gmra.mrb[0].mxu0 %v1626
    %v1703 = vpop.f32.mrb[0].mxu0
    %v1704 = vadd.f32 %v1607, %v1703
    %v1705 = vpop.f32.mrb[0].mxu0
    %1706 = vmatprep.mubr.f32.mxu0 0.0
    %1707 = vmatmul.mubr.f32.gmra.mrb[0].mxu0 %v1629
    %v1708 = vpop.f32.mrb[0].mxu0
    %v1709 = vadd.f32 %v1612, %v1708
    %v1710 = vpop.f32.mrb[0].mxu0
    %1711 = vmatprep.mubr.f32.mxu0 0.0
    %1712 = vmatmul.mubr.f32.gmra.mrb[0].mxu0 %v1632
    %v1713 = vpop.f32.mrb[0].mxu0
    %v1714 = vadd.f32 %v1617, %v1713
    %v1715 = vpop.f32.mrb[0].mxu0
    %1716 = vmatprep.mubr.f32.mxu0 0.0
    %1717 = vmatmul.mubr.f32.gmra.mrb[0].mxu0 %v1635
    %v1718 = vpop.f32.mrb[0].mxu0
    %v1719 = vadd.f32 %v1622, %v1718
    %v1720 = vpop.f32.mrb[0].mxu0
    %1721 = vdwg.mxu0
    %v1722 = vmax.f32 %v1704, 0.0
    %v1723 = vmax.f32 %v1709, 0.0
    %v1724 = vmax.f32 %v1714, 0.0
    %v1725 = vmax.f32 %v1719, 0.0
    %1726 = vst [vmem:[#allocation2 + $0x40] sm:$0xff] %v1722
    %1727 = vst [vmem:[#allocation2 + $0x48] sm:$0xff] %v1723
    %1728 = vst [vmem:[#allocation2 + $0x50] sm:$0xff] %v1724
    %1729 = vst [vmem:[#allocation2 + $0x58] sm:$0xff] %v1725
    // Predicated region
    $region18: #{tpu_custom_call.1} parent=1 // pred_check
      _
    $region19: #{tpu_custom_call.1} parent=1 // pred_check_branch
      %1731 = sbr.rel (0) target = $region21
    $region20: #{tpu_custom_call.1} parent=1 // pred_region
      %s1733 = ssub.s32 1536, 1536
      %1734 = vsyncadd [#allocation3], %s1733
      %s1735 = sshll.u32 [#allocation2], 4
      %s1736 = int_to_ptr.vmem [resolvable:$true] %s1735
      %1741 = dma.vmem_to_hbm [thread:$0]  %s1736, 1536, %s4, [#allocation3], 128, 128, 8
    $region21: #{tpu_custom_call.1} parent=1 // pred_fallthru
      _
    // Predicated region
    $region22: #{tpu_custom_call.1} parent=1 // pred_check
      _
    $region23: #{tpu_custom_call.1} parent=1 // pred_check_branch
      %1743 = sbr.rel (0) target = $region25
    $region24: #{tpu_custom_call.1} parent=1 // pred_region
      %1744 = dma.done [#allocation3], 1536
    $region25: #{tpu_custom_call.1} parent=1 // pred_fallthru
      _
    %1745 = vsyncpa [#allocation3], 1

</llo_original>
